<compile_context>
chip_gen: v5e
topology: v5e:2x2
jax: 0.10.0
libtpu: 0.0.40
codegen_flags: <defaults>
</compile_context>

<pallas_src>
import functools

import jax
import jax.numpy as jnp
from jax import lax
from jax.experimental import pallas as pl
from jax.experimental.pallas import tpu as pltpu


# ---------------------------------------------------------------------------
# Fused kernel: QKV projection + per-(batch, head) softmax attention + out proj
# ---------------------------------------------------------------------------
def fused_attention_kernel(x_ref, wqkv_ref, wout_ref, bout_ref, o_ref, *,
                           heads, dim_head, seq_len, batch_block, model_dim,
                           scale):
    inner = heads * dim_head

    # bf16 MXU operands; f32 accumulation via preferred_element_type.
    x = x_ref[...].astype(jnp.bfloat16)            # [Bb*N, dim]
    w_qkv = wqkv_ref[...].astype(jnp.bfloat16)     # [dim, 3*inner]
    w_out = wout_ref[...].astype(jnp.bfloat16)     # [inner, dim]
    bias = bout_ref[...]                           # [1, dim] (f32)

    # One row-dense QKV projection for every batch in this block.
    qkv = jnp.dot(x, w_qkv, preferred_element_type=jnp.float32)  # [Bb*N, 3*inner]

    # batch_block and heads are small and static here -> unrolled Python loops.
    # TODO(synk): for large `heads`, use lax.fori_loop + VMEM scratch accumulator
    # to bound live ranges (static Python loops do not).
    for b in range(batch_block):
        rows = slice(b * seq_len, (b + 1) * seq_len)
        acc = jnp.zeros((seq_len, model_dim), jnp.float32)

        for h in range(heads):
            q_sl = slice(h * dim_head, (h + 1) * dim_head)
            k_sl = slice(inner + h * dim_head, inner + (h + 1) * dim_head)
            v_sl = slice(2 * inner + h * dim_head, 2 * inner + (h + 1) * dim_head)

            qh = qkv[rows, q_sl] * scale           # scale folded into q (f32)
            kh = qkv[rows, k_sl]
            vh = qkv[rows, v_sl]

            # Scores: contract last dims directly (no explicit kh.T transpose).
            s = lax.dot_general(
                qh.astype(jnp.bfloat16), kh.astype(jnp.bfloat16),
                dimension_numbers=(((1,), (1,)), ((), ())),
                preferred_element_type=jnp.float32)            # [N, N]

            # Numerically-stable softmax, exact divide, all in f32.
            s = s - jnp.max(s, axis=-1, keepdims=True)
            p = jnp.exp(s)
            p = p / jnp.sum(p, axis=-1, keepdims=True)

            # P @ V for this head.
            oh = jnp.dot(p.astype(jnp.bfloat16), vh.astype(jnp.bfloat16),
                         preferred_element_type=jnp.float32)   # [N, dim_head]

            # Per-head accumulation of the output projection: mathematically
            # identical to concat(heads) @ W_out, but pure MXU accumulation.
            acc = acc + jnp.dot(oh.astype(jnp.bfloat16), w_out[q_sl, :],
                                preferred_element_type=jnp.float32)  # [N, dim]

        # Dropout(p=0.0) is identity; add bias once and store this batch's rows.
        o_ref[rows, :] = (acc + bias).astype(o_ref.dtype)


# ---------------------------------------------------------------------------
# Wrapper reproducing Attention.forward
# ---------------------------------------------------------------------------
def attention_forward(x, w_qkv, w_out, b_out, *, heads, dim_head,
                      target_rows=256):
    """x: [B, N, dim]; w_qkv: [dim, 3*inner]; w_out: [inner, dim]; b_out: [dim]."""
    # NOTE: assumes project_out == True (the to_out Linear+Dropout branch); the
    # heads==1 and dim_head==dim Identity branch is not exercised here.
    B, N, dim = x.shape
    inner = heads * dim_head
    scale = dim_head ** -0.5

    # Batch several examples per grid step so the projection matmuls see
    # ~target_rows rows; keep it a divisor of B.
    batch_block = min(B, max(1, target_rows // N))
    while B % batch_block:
        batch_block -= 1
    grid = (B // batch_block,)
    rows_per_step = batch_block * N

    x_flat = x.reshape(B * N, dim)                 # free, contiguous reshape

    kern = functools.partial(
        fused_attention_kernel, heads=heads, dim_head=dim_head, seq_len=N,
        batch_block=batch_block, model_dim=dim, scale=scale)

    def _run(weight_pipeline_mode):
        wkw = ({} if weight_pipeline_mode is None
               else {"pipeline_mode": weight_pipeline_mode})
        in_specs = [
            pl.BlockSpec((rows_per_step, dim), lambda g: (g, 0)),       # x rows
            pl.BlockSpec((dim, 3 * inner), lambda g: (0, 0), **wkw),    # W_qkv
            pl.BlockSpec((inner, dim), lambda g: (0, 0), **wkw),        # W_out
            pl.BlockSpec((1, dim), lambda g: (0, 0), **wkw),            # b_out
        ]
        out_specs = pl.BlockSpec((rows_per_step, dim), lambda g: (g, 0))
        return pl.pallas_call(
            kern,
            out_shape=jax.ShapeDtypeStruct((B * N, dim), x.dtype),
            grid_spec=pltpu.PrefetchScalarGridSpec(
                num_scalar_prefetch=0,
                grid=grid,
                in_specs=in_specs,
                out_specs=out_specs,
            ),
            compiler_params=pltpu.CompilerParams(
                dimension_semantics=("parallel",)),
        )(x_flat, w_qkv, w_out, b_out.reshape(1, dim))

    try:
        # Weights/bias have constant index_maps -> single-buffer them (halves
        # their VMEM footprint; matters most on v7x with 64 MiB VMEM).
        out_flat = _run(pl.Buffered(1))
    except Exception:
        # TODO(synk): some Pallas builds reject Buffered(1); fall back to the
        # default double-buffered weight blocks (same math, slightly more VMEM).
        out_flat = _run(None)

    return out_flat.reshape(B, N, dim)


# ---------------------------------------------------------------------------
# Pure-JAX reference (matches the PyTorch module's forward)
# ---------------------------------------------------------------------------
def attention_reference(x, w_qkv, w_out, b_out, *, heads, dim_head):
    B, N, dim = x.shape
    scale = dim_head ** -0.5
    qkv = x @ w_qkv
    q, k, v = jnp.split(qkv, 3, axis=-1)

    def split_heads(t):
        return t.reshape(B, N, heads, dim_head).transpose(0, 2, 1, 3)

    q, k, v = map(split_heads, (q, k, v))
    dots = jnp.einsum("bhnd,bhmd->bhnm", q, k) * scale
    attn = jax.nn.softmax(dots, axis=-1)
    out = jnp.einsum("bhnm,bhmd->bhnd", attn, v)
    out = out.transpose(0, 2, 1, 3).reshape(B, N, heads * dim_head)
    return out @ w_out + b_out


if __name__ == "__main__":
    # Small shapes consistent with the module's forward:
    B, N, dim = 2, 8, 32
    heads, dim_head = 4, 16
    inner = heads * dim_head          # 64 != dim -> project_out == True

    key = jax.random.PRNGKey(0)
    kx, kq, ko, kb = jax.random.split(key, 4)

    x = jax.random.normal(kx, (B, N, dim), dtype=jnp.float32)
    # to_qkv: Linear(dim, 3*inner, bias=False); stored as [dim, 3*inner] (x @ W)
    w_qkv = jax.random.normal(kq, (dim, 3 * inner), dtype=jnp.float32) * 0.1
    # to_out[0]: Linear(inner, dim) with bias; stored as [inner, dim]
    w_out = jax.random.normal(ko, (inner, dim), dtype=jnp.float32) * 0.1
    b_out = jax.random.normal(kb, (dim,), dtype=jnp.float32) * 0.1

    out = attention_forward(x, w_qkv, w_out, b_out, heads=heads, dim_head=dim_head)
    out = jax.block_until_ready(out)

    ref = attention_reference(x, w_qkv, w_out, b_out, heads=heads, dim_head=dim_head)
    assert out.shape == (B, N, dim)
    # Softmax is exact f32; tolerance reflects bf16 MXU operands only.
    assert jnp.allclose(out, ref, atol=3e-2, rtol=3e-2), "mismatch vs JAX reference"

    print("KERNEL_OK")
</pallas_src>

<mosaic_0001>
module attributes {stable_mosaic.version = 11 : i64} {
  func.func @fused_attention_kernel(%arg0: i32, %arg1: memref<16x32xf32, #tpu.memory_space<vmem>>, %arg2: memref<32x192xf32, #tpu.memory_space<vmem>>, %arg3: memref<64x32xf32, #tpu.memory_space<vmem>>, %arg4: memref<1x32xf32, #tpu.memory_space<vmem>>, %arg5: memref<16x32xf32, #tpu.memory_space<vmem>>) attributes {dimension_semantics = [#tpu.dimension_semantics<parallel>], iteration_bounds = array<i64: 1>, scalar_prefetch = 0 : i64, scratch_operands = 0 : i64, tpu.core_type = #tpu.core_type<tc>, window_params = [{transform_indices = @transform_0, window_bounds = array<i64: 16, 32>}, {pipeline_mode = #tpu.pipeline_mode<synchronous>, transform_indices = @transform_1, window_bounds = array<i64: 32, 192>}, {pipeline_mode = #tpu.pipeline_mode<synchronous>, transform_indices = @transform_2, window_bounds = array<i64: 64, 32>}, {pipeline_mode = #tpu.pipeline_mode<synchronous>, transform_indices = @transform_3, window_bounds = array<i64: 1, 32>}, {transform_indices = @transform_4, window_bounds = array<i64: 16, 32>}]} {
    %c0 = arith.constant 0 : index
    %c0_0 = arith.constant 0 : index
    %0 = vector.load %arg1[%c0, %c0_0] : memref<16x32xf32, #tpu.memory_space<vmem>>, vector<16x32xf32>
    %1 = arith.truncf %0 : vector<16x32xf32> to vector<16x32xbf16>
    %c0_1 = arith.constant 0 : index
    %c0_2 = arith.constant 0 : index
    %2 = vector.load %arg2[%c0_1, %c0_2] : memref<32x192xf32, #tpu.memory_space<vmem>>, vector<32x192xf32>
    %3 = arith.truncf %2 : vector<32x192xf32> to vector<32x192xbf16>
    %c0_3 = arith.constant 0 : index
    %c0_4 = arith.constant 0 : index
    %4 = vector.load %arg3[%c0_3, %c0_4] : memref<64x32xf32, #tpu.memory_space<vmem>>, vector<64x32xf32>
    %5 = arith.truncf %4 : vector<64x32xf32> to vector<64x32xbf16>
    %c0_5 = arith.constant 0 : index
    %c0_6 = arith.constant 0 : index
    %6 = vector.load %arg4[%c0_5, %c0_6] : memref<1x32xf32, #tpu.memory_space<vmem>>, vector<1x32xf32>
    %cst = arith.constant dense<0.000000e+00> : vector<16x192xf32>
    %7 = tpu.matmul %1, %3, %cst {dimension_numbers = #tpu.dot_dimension_numbers<[1], [0], [0], [1], [0, 0, 1, 1], [], []>} : vector<16x32xbf16>, vector<32x192xbf16>, vector<16x192xf32> -> vector<16x192xf32>
    %cst_7 = arith.constant 0.000000e+00 : f32
    %8 = vector.broadcast %cst_7 : f32 to vector<8x32xf32>
    %9 = vector.extract_strided_slice %7 {offsets = [0, 0], sizes = [8, 16], strides = [1, 1]} : vector<16x192xf32> to vector<8x16xf32>
    %cst_8 = arith.constant 2.500000e-01 : f32
    %10 = vector.broadcast %cst_8 : f32 to vector<8x16xf32>
    %11 = arith.mulf %9, %10 : vector<8x16xf32>
    %12 = vector.extract_strided_slice %7 {offsets = [0, 64], sizes = [8, 16], strides = [1, 1]} : vector<16x192xf32> to vector<8x16xf32>
    %13 = vector.extract_strided_slice %7 {offsets = [0, 128], sizes = [8, 16], strides = [1, 1]} : vector<16x192xf32> to vector<8x16xf32>
    %14 = arith.truncf %11 : vector<8x16xf32> to vector<8x16xbf16>
    %15 = arith.truncf %12 : vector<8x16xf32> to vector<8x16xbf16>
    %cst_9 = arith.constant dense<0.000000e+00> : vector<8x8xf32>
    %16 = tpu.matmul %14, %15, %cst_9 {dimension_numbers = #tpu.dot_dimension_numbers<[1], [1], [0], [0], [0, 0, 1, 0], [], []>} : vector<8x16xbf16>, vector<8x16xbf16>, vector<8x8xf32> -> vector<8x8xf32>
    %cst_10 = arith.constant dense<0xFF800000> : vector<8xf32>
    %17 = vector.multi_reduction <maximumf>, %16, %cst_10 [1] : vector<8x8xf32> to vector<8xf32>
    %18 = vector.shape_cast %17 : vector<8xf32> to vector<8x1xf32>
    %19 = vector.broadcast %18 : vector<8x1xf32> to vector<8x8xf32>
    %20 = arith.subf %16, %19 : vector<8x8xf32>
    %21 = math.exp %20 : vector<8x8xf32>
    %cst_11 = arith.constant dense<0.000000e+00> : vector<8xf32>
    %22 = vector.multi_reduction <add>, %21, %cst_11 [1] : vector<8x8xf32> to vector<8xf32>
    %23 = vector.shape_cast %22 : vector<8xf32> to vector<8x1xf32>
    %24 = vector.broadcast %23 : vector<8x1xf32> to vector<8x8xf32>
    %25 = arith.divf %21, %24 : vector<8x8xf32>
    %26 = arith.truncf %25 : vector<8x8xf32> to vector<8x8xbf16>
    %27 = arith.truncf %13 : vector<8x16xf32> to vector<8x16xbf16>
    %cst_12 = arith.constant dense<0.000000e+00> : vector<8x16xf32>
    %28 = tpu.matmul %26, %27, %cst_12 {dimension_numbers = #tpu.dot_dimension_numbers<[1], [0], [0], [1], [0, 0, 1, 1], [], []>} : vector<8x8xbf16>, vector<8x16xbf16>, vector<8x16xf32> -> vector<8x16xf32>
    %29 = arith.truncf %28 : vector<8x16xf32> to vector<8x16xbf16>
    %30 = vector.extract_strided_slice %5 {offsets = [0, 0], sizes = [16, 32], strides = [1, 1]} : vector<64x32xbf16> to vector<16x32xbf16>
    %cst_13 = arith.constant dense<0.000000e+00> : vector<8x32xf32>
    %31 = tpu.matmul %29, %30, %cst_13 {dimension_numbers = #tpu.dot_dimension_numbers<[1], [0], [0], [1], [0, 0, 1, 1], [], []>} : vector<8x16xbf16>, vector<16x32xbf16>, vector<8x32xf32> -> vector<8x32xf32>
    %32 = arith.addf %8, %31 : vector<8x32xf32>
    %33 = vector.extract_strided_slice %7 {offsets = [0, 16], sizes = [8, 16], strides = [1, 1]} : vector<16x192xf32> to vector<8x16xf32>
    %cst_14 = arith.constant 2.500000e-01 : f32
    %34 = vector.broadcast %cst_14 : f32 to vector<8x16xf32>
    %35 = arith.mulf %33, %34 : vector<8x16xf32>
    %36 = vector.extract_strided_slice %7 {offsets = [0, 80], sizes = [8, 16], strides = [1, 1]} : vector<16x192xf32> to vector<8x16xf32>
    %37 = vector.extract_strided_slice %7 {offsets = [0, 144], sizes = [8, 16], strides = [1, 1]} : vector<16x192xf32> to vector<8x16xf32>
    %38 = arith.truncf %35 : vector<8x16xf32> to vector<8x16xbf16>
    %39 = arith.truncf %36 : vector<8x16xf32> to vector<8x16xbf16>
    %cst_15 = arith.constant dense<0.000000e+00> : vector<8x8xf32>
    %40 = tpu.matmul %38, %39, %cst_15 {dimension_numbers = #tpu.dot_dimension_numbers<[1], [1], [0], [0], [0, 0, 1, 0], [], []>} : vector<8x16xbf16>, vector<8x16xbf16>, vector<8x8xf32> -> vector<8x8xf32>
    %cst_16 = arith.constant dense<0xFF800000> : vector<8xf32>
    %41 = vector.multi_reduction <maximumf>, %40, %cst_16 [1] : vector<8x8xf32> to vector<8xf32>
    %42 = vector.shape_cast %41 : vector<8xf32> to vector<8x1xf32>
    %43 = vector.broadcast %42 : vector<8x1xf32> to vector<8x8xf32>
    %44 = arith.subf %40, %43 : vector<8x8xf32>
    %45 = math.exp %44 : vector<8x8xf32>
    %cst_17 = arith.constant dense<0.000000e+00> : vector<8xf32>
    %46 = vector.multi_reduction <add>, %45, %cst_17 [1] : vector<8x8xf32> to vector<8xf32>
    %47 = vector.shape_cast %46 : vector<8xf32> to vector<8x1xf32>
    %48 = vector.broadcast %47 : vector<8x1xf32> to vector<8x8xf32>
    %49 = arith.divf %45, %48 : vector<8x8xf32>
    %50 = arith.truncf %49 : vector<8x8xf32> to vector<8x8xbf16>
    %51 = arith.truncf %37 : vector<8x16xf32> to vector<8x16xbf16>
    %cst_18 = arith.constant dense<0.000000e+00> : vector<8x16xf32>
    %52 = tpu.matmul %50, %51, %cst_18 {dimension_numbers = #tpu.dot_dimension_numbers<[1], [0], [0], [1], [0, 0, 1, 1], [], []>} : vector<8x8xbf16>, vector<8x16xbf16>, vector<8x16xf32> -> vector<8x16xf32>
    %53 = arith.truncf %52 : vector<8x16xf32> to vector<8x16xbf16>
    %54 = vector.extract_strided_slice %5 {offsets = [16, 0], sizes = [16, 32], strides = [1, 1]} : vector<64x32xbf16> to vector<16x32xbf16>
    %cst_19 = arith.constant dense<0.000000e+00> : vector<8x32xf32>
    %55 = tpu.matmul %53, %54, %cst_19 {dimension_numbers = #tpu.dot_dimension_numbers<[1], [0], [0], [1], [0, 0, 1, 1], [], []>} : vector<8x16xbf16>, vector<16x32xbf16>, vector<8x32xf32> -> vector<8x32xf32>
    %56 = arith.addf %32, %55 : vector<8x32xf32>
    %57 = vector.extract_strided_slice %7 {offsets = [0, 32], sizes = [8, 16], strides = [1, 1]} : vector<16x192xf32> to vector<8x16xf32>
    %cst_20 = arith.constant 2.500000e-01 : f32
    %58 = vector.broadcast %cst_20 : f32 to vector<8x16xf32>
    %59 = arith.mulf %57, %58 : vector<8x16xf32>
    %60 = vector.extract_strided_slice %7 {offsets = [0, 96], sizes = [8, 16], strides = [1, 1]} : vector<16x192xf32> to vector<8x16xf32>
    %61 = vector.extract_strided_slice %7 {offsets = [0, 160], sizes = [8, 16], strides = [1, 1]} : vector<16x192xf32> to vector<8x16xf32>
    %62 = arith.truncf %59 : vector<8x16xf32> to vector<8x16xbf16>
    %63 = arith.truncf %60 : vector<8x16xf32> to vector<8x16xbf16>
    %cst_21 = arith.constant dense<0.000000e+00> : vector<8x8xf32>
    %64 = tpu.matmul %62, %63, %cst_21 {dimension_numbers = #tpu.dot_dimension_numbers<[1], [1], [0], [0], [0, 0, 1, 0], [], []>} : vector<8x16xbf16>, vector<8x16xbf16>, vector<8x8xf32> -> vector<8x8xf32>
    %cst_22 = arith.constant dense<0xFF800000> : vector<8xf32>
    %65 = vector.multi_reduction <maximumf>, %64, %cst_22 [1] : vector<8x8xf32> to vector<8xf32>
    %66 = vector.shape_cast %65 : vector<8xf32> to vector<8x1xf32>
    %67 = vector.broadcast %66 : vector<8x1xf32> to vector<8x8xf32>
    %68 = arith.subf %64, %67 : vector<8x8xf32>
    %69 = math.exp %68 : vector<8x8xf32>
    %cst_23 = arith.constant dense<0.000000e+00> : vector<8xf32>
    %70 = vector.multi_reduction <add>, %69, %cst_23 [1] : vector<8x8xf32> to vector<8xf32>
    %71 = vector.shape_cast %70 : vector<8xf32> to vector<8x1xf32>
    %72 = vector.broadcast %71 : vector<8x1xf32> to vector<8x8xf32>
    %73 = arith.divf %69, %72 : vector<8x8xf32>
    %74 = arith.truncf %73 : vector<8x8xf32> to vector<8x8xbf16>
    %75 = arith.truncf %61 : vector<8x16xf32> to vector<8x16xbf16>
    %cst_24 = arith.constant dense<0.000000e+00> : vector<8x16xf32>
    %76 = tpu.matmul %74, %75, %cst_24 {dimension_numbers = #tpu.dot_dimension_numbers<[1], [0], [0], [1], [0, 0, 1, 1], [], []>} : vector<8x8xbf16>, vector<8x16xbf16>, vector<8x16xf32> -> vector<8x16xf32>
    %77 = arith.truncf %76 : vector<8x16xf32> to vector<8x16xbf16>
    %78 = vector.extract_strided_slice %5 {offsets = [32, 0], sizes = [16, 32], strides = [1, 1]} : vector<64x32xbf16> to vector<16x32xbf16>
    %cst_25 = arith.constant dense<0.000000e+00> : vector<8x32xf32>
    %79 = tpu.matmul %77, %78, %cst_25 {dimension_numbers = #tpu.dot_dimension_numbers<[1], [0], [0], [1], [0, 0, 1, 1], [], []>} : vector<8x16xbf16>, vector<16x32xbf16>, vector<8x32xf32> -> vector<8x32xf32>
    %80 = arith.addf %56, %79 : vector<8x32xf32>
    %81 = vector.extract_strided_slice %7 {offsets = [0, 48], sizes = [8, 16], strides = [1, 1]} : vector<16x192xf32> to vector<8x16xf32>
    %cst_26 = arith.constant 2.500000e-01 : f32
    %82 = vector.broadcast %cst_26 : f32 to vector<8x16xf32>
    %83 = arith.mulf %81, %82 : vector<8x16xf32>
    %84 = vector.extract_strided_slice %7 {offsets = [0, 112], sizes = [8, 16], strides = [1, 1]} : vector<16x192xf32> to vector<8x16xf32>
    %85 = vector.extract_strided_slice %7 {offsets = [0, 176], sizes = [8, 16], strides = [1, 1]} : vector<16x192xf32> to vector<8x16xf32>
    %86 = arith.truncf %83 : vector<8x16xf32> to vector<8x16xbf16>
    %87 = arith.truncf %84 : vector<8x16xf32> to vector<8x16xbf16>
    %cst_27 = arith.constant dense<0.000000e+00> : vector<8x8xf32>
    %88 = tpu.matmul %86, %87, %cst_27 {dimension_numbers = #tpu.dot_dimension_numbers<[1], [1], [0], [0], [0, 0, 1, 0], [], []>} : vector<8x16xbf16>, vector<8x16xbf16>, vector<8x8xf32> -> vector<8x8xf32>
    %cst_28 = arith.constant dense<0xFF800000> : vector<8xf32>
    %89 = vector.multi_reduction <maximumf>, %88, %cst_28 [1] : vector<8x8xf32> to vector<8xf32>
    %90 = vector.shape_cast %89 : vector<8xf32> to vector<8x1xf32>
    %91 = vector.broadcast %90 : vector<8x1xf32> to vector<8x8xf32>
    %92 = arith.subf %88, %91 : vector<8x8xf32>
    %93 = math.exp %92 : vector<8x8xf32>
    %cst_29 = arith.constant dense<0.000000e+00> : vector<8xf32>
    %94 = vector.multi_reduction <add>, %93, %cst_29 [1] : vector<8x8xf32> to vector<8xf32>
    %95 = vector.shape_cast %94 : vector<8xf32> to vector<8x1xf32>
    %96 = vector.broadcast %95 : vector<8x1xf32> to vector<8x8xf32>
    %97 = arith.divf %93, %96 : vector<8x8xf32>
    %98 = arith.truncf %97 : vector<8x8xf32> to vector<8x8xbf16>
    %99 = arith.truncf %85 : vector<8x16xf32> to vector<8x16xbf16>
    %cst_30 = arith.constant dense<0.000000e+00> : vector<8x16xf32>
    %100 = tpu.matmul %98, %99, %cst_30 {dimension_numbers = #tpu.dot_dimension_numbers<[1], [0], [0], [1], [0, 0, 1, 1], [], []>} : vector<8x8xbf16>, vector<8x16xbf16>, vector<8x16xf32> -> vector<8x16xf32>
    %101 = arith.truncf %100 : vector<8x16xf32> to vector<8x16xbf16>
    %102 = vector.extract_strided_slice %5 {offsets = [48, 0], sizes = [16, 32], strides = [1, 1]} : vector<64x32xbf16> to vector<16x32xbf16>
    %cst_31 = arith.constant dense<0.000000e+00> : vector<8x32xf32>
    %103 = tpu.matmul %101, %102, %cst_31 {dimension_numbers = #tpu.dot_dimension_numbers<[1], [0], [0], [1], [0, 0, 1, 1], [], []>} : vector<8x16xbf16>, vector<16x32xbf16>, vector<8x32xf32> -> vector<8x32xf32>
    %104 = arith.addf %80, %103 : vector<8x32xf32>
    %105 = vector.broadcast %6 : vector<1x32xf32> to vector<8x32xf32>
    %106 = arith.addf %104, %105 : vector<8x32xf32>
    %c0_32 = arith.constant 0 : index
    %c0_33 = arith.constant 0 : index
    %107 = vector.load %arg5[%c0_32, %c0_33] : memref<16x32xf32, #tpu.memory_space<vmem>>, vector<8x32xf32>
    tpu.vector_store %arg5[%c0_32, %c0_33], %106 {strides = array<i32>} : memref<16x32xf32, #tpu.memory_space<vmem>>, vector<8x32xf32>,
    %cst_34 = arith.constant 0.000000e+00 : f32
    %108 = vector.broadcast %cst_34 : f32 to vector<8x32xf32>
    %109 = vector.extract_strided_slice %7 {offsets = [8, 0], sizes = [8, 16], strides = [1, 1]} : vector<16x192xf32> to vector<8x16xf32>
    %cst_35 = arith.constant 2.500000e-01 : f32
    %110 = vector.broadcast %cst_35 : f32 to vector<8x16xf32>
    %111 = arith.mulf %109, %110 : vector<8x16xf32>
    %112 = vector.extract_strided_slice %7 {offsets = [8, 64], sizes = [8, 16], strides = [1, 1]} : vector<16x192xf32> to vector<8x16xf32>
    %113 = vector.extract_strided_slice %7 {offsets = [8, 128], sizes = [8, 16], strides = [1, 1]} : vector<16x192xf32> to vector<8x16xf32>
    %114 = arith.truncf %111 : vector<8x16xf32> to vector<8x16xbf16>
    %115 = arith.truncf %112 : vector<8x16xf32> to vector<8x16xbf16>
    %cst_36 = arith.constant dense<0.000000e+00> : vector<8x8xf32>
    %116 = tpu.matmul %114, %115, %cst_36 {dimension_numbers = #tpu.dot_dimension_numbers<[1], [1], [0], [0], [0, 0, 1, 0], [], []>} : vector<8x16xbf16>, vector<8x16xbf16>, vector<8x8xf32> -> vector<8x8xf32>
    %cst_37 = arith.constant dense<0xFF800000> : vector<8xf32>
    %117 = vector.multi_reduction <maximumf>, %116, %cst_37 [1] : vector<8x8xf32> to vector<8xf32>
    %118 = vector.shape_cast %117 : vector<8xf32> to vector<8x1xf32>
    %119 = vector.broadcast %118 : vector<8x1xf32> to vector<8x8xf32>
    %120 = arith.subf %116, %119 : vector<8x8xf32>
    %121 = math.exp %120 : vector<8x8xf32>
    %cst_38 = arith.constant dense<0.000000e+00> : vector<8xf32>
    %122 = vector.multi_reduction <add>, %121, %cst_38 [1] : vector<8x8xf32> to vector<8xf32>
    %123 = vector.shape_cast %122 : vector<8xf32> to vector<8x1xf32>
    %124 = vector.broadcast %123 : vector<8x1xf32> to vector<8x8xf32>
    %125 = arith.divf %121, %124 : vector<8x8xf32>
    %126 = arith.truncf %125 : vector<8x8xf32> to vector<8x8xbf16>
    %127 = arith.truncf %113 : vector<8x16xf32> to vector<8x16xbf16>
    %cst_39 = arith.constant dense<0.000000e+00> : vector<8x16xf32>
    %128 = tpu.matmul %126, %127, %cst_39 {dimension_numbers = #tpu.dot_dimension_numbers<[1], [0], [0], [1], [0, 0, 1, 1], [], []>} : vector<8x8xbf16>, vector<8x16xbf16>, vector<8x16xf32> -> vector<8x16xf32>
    %129 = arith.truncf %128 : vector<8x16xf32> to vector<8x16xbf16>
    %130 = vector.extract_strided_slice %5 {offsets = [0, 0], sizes = [16, 32], strides = [1, 1]} : vector<64x32xbf16> to vector<16x32xbf16>
    %cst_40 = arith.constant dense<0.000000e+00> : vector<8x32xf32>
    %131 = tpu.matmul %129, %130, %cst_40 {dimension_numbers = #tpu.dot_dimension_numbers<[1], [0], [0], [1], [0, 0, 1, 1], [], []>} : vector<8x16xbf16>, vector<16x32xbf16>, vector<8x32xf32> -> vector<8x32xf32>
    %132 = arith.addf %108, %131 : vector<8x32xf32>
    %133 = vector.extract_strided_slice %7 {offsets = [8, 16], sizes = [8, 16], strides = [1, 1]} : vector<16x192xf32> to vector<8x16xf32>
    %cst_41 = arith.constant 2.500000e-01 : f32
    %134 = vector.broadcast %cst_41 : f32 to vector<8x16xf32>
    %135 = arith.mulf %133, %134 : vector<8x16xf32>
    %136 = vector.extract_strided_slice %7 {offsets = [8, 80], sizes = [8, 16], strides = [1, 1]} : vector<16x192xf32> to vector<8x16xf32>
    %137 = vector.extract_strided_slice %7 {offsets = [8, 144], sizes = [8, 16], strides = [1, 1]} : vector<16x192xf32> to vector<8x16xf32>
    %138 = arith.truncf %135 : vector<8x16xf32> to vector<8x16xbf16>
    %139 = arith.truncf %136 : vector<8x16xf32> to vector<8x16xbf16>
    %cst_42 = arith.constant dense<0.000000e+00> : vector<8x8xf32>
    %140 = tpu.matmul %138, %139, %cst_42 {dimension_numbers = #tpu.dot_dimension_numbers<[1], [1], [0], [0], [0, 0, 1, 0], [], []>} : vector<8x16xbf16>, vector<8x16xbf16>, vector<8x8xf32> -> vector<8x8xf32>
    %cst_43 = arith.constant dense<0xFF800000> : vector<8xf32>
    %141 = vector.multi_reduction <maximumf>, %140, %cst_43 [1] : vector<8x8xf32> to vector<8xf32>
    %142 = vector.shape_cast %141 : vector<8xf32> to vector<8x1xf32>
    %143 = vector.broadcast %142 : vector<8x1xf32> to vector<8x8xf32>
    %144 = arith.subf %140, %143 : vector<8x8xf32>
    %145 = math.exp %144 : vector<8x8xf32>
    %cst_44 = arith.constant dense<0.000000e+00> : vector<8xf32>
    %146 = vector.multi_reduction <add>, %145, %cst_44 [1] : vector<8x8xf32> to vector<8xf32>
    %147 = vector.shape_cast %146 : vector<8xf32> to vector<8x1xf32>
    %148 = vector.broadcast %147 : vector<8x1xf32> to vector<8x8xf32>
    %149 = arith.divf %145, %148 : vector<8x8xf32>
    %150 = arith.truncf %149 : vector<8x8xf32> to vector<8x8xbf16>
    %151 = arith.truncf %137 : vector<8x16xf32> to vector<8x16xbf16>
    %cst_45 = arith.constant dense<0.000000e+00> : vector<8x16xf32>
    %152 = tpu.matmul %150, %151, %cst_45 {dimension_numbers = #tpu.dot_dimension_numbers<[1], [0], [0], [1], [0, 0, 1, 1], [], []>} : vector<8x8xbf16>, vector<8x16xbf16>, vector<8x16xf32> -> vector<8x16xf32>
    %153 = arith.truncf %152 : vector<8x16xf32> to vector<8x16xbf16>
    %154 = vector.extract_strided_slice %5 {offsets = [16, 0], sizes = [16, 32], strides = [1, 1]} : vector<64x32xbf16> to vector<16x32xbf16>
    %cst_46 = arith.constant dense<0.000000e+00> : vector<8x32xf32>
    %155 = tpu.matmul %153, %154, %cst_46 {dimension_numbers = #tpu.dot_dimension_numbers<[1], [0], [0], [1], [0, 0, 1, 1], [], []>} : vector<8x16xbf16>, vector<16x32xbf16>, vector<8x32xf32> -> vector<8x32xf32>
    %156 = arith.addf %132, %155 : vector<8x32xf32>
    %157 = vector.extract_strided_slice %7 {offsets = [8, 32], sizes = [8, 16], strides = [1, 1]} : vector<16x192xf32> to vector<8x16xf32>
    %cst_47 = arith.constant 2.500000e-01 : f32
    %158 = vector.broadcast %cst_47 : f32 to vector<8x16xf32>
    %159 = arith.mulf %157, %158 : vector<8x16xf32>
    %160 = vector.extract_strided_slice %7 {offsets = [8, 96], sizes = [8, 16], strides = [1, 1]} : vector<16x192xf32> to vector<8x16xf32>
    %161 = vector.extract_strided_slice %7 {offsets = [8, 160], sizes = [8, 16], strides = [1, 1]} : vector<16x192xf32> to vector<8x16xf32>
    %162 = arith.truncf %159 : vector<8x16xf32> to vector<8x16xbf16>
    %163 = arith.truncf %160 : vector<8x16xf32> to vector<8x16xbf16>
    %cst_48 = arith.constant dense<0.000000e+00> : vector<8x8xf32>
    %164 = tpu.matmul %162, %163, %cst_48 {dimension_numbers = #tpu.dot_dimension_numbers<[1], [1], [0], [0], [0, 0, 1, 0], [], []>} : vector<8x16xbf16>, vector<8x16xbf16>, vector<8x8xf32> -> vector<8x8xf32>
    %cst_49 = arith.constant dense<0xFF800000> : vector<8xf32>
    %165 = vector.multi_reduction <maximumf>, %164, %cst_49 [1] : vector<8x8xf32> to vector<8xf32>
    %166 = vector.shape_cast %165 : vector<8xf32> to vector<8x1xf32>
    %167 = vector.broadcast %166 : vector<8x1xf32> to vector<8x8xf32>
    %168 = arith.subf %164, %167 : vector<8x8xf32>
    %169 = math.exp %168 : vector<8x8xf32>
    %cst_50 = arith.constant dense<0.000000e+00> : vector<8xf32>
    %170 = vector.multi_reduction <add>, %169, %cst_50 [1] : vector<8x8xf32> to vector<8xf32>
    %171 = vector.shape_cast %170 : vector<8xf32> to vector<8x1xf32>
    %172 = vector.broadcast %171 : vector<8x1xf32> to vector<8x8xf32>
    %173 = arith.divf %169, %172 : vector<8x8xf32>
    %174 = arith.truncf %173 : vector<8x8xf32> to vector<8x8xbf16>
    %175 = arith.truncf %161 : vector<8x16xf32> to vector<8x16xbf16>
    %cst_51 = arith.constant dense<0.000000e+00> : vector<8x16xf32>
    %176 = tpu.matmul %174, %175, %cst_51 {dimension_numbers = #tpu.dot_dimension_numbers<[1], [0], [0], [1], [0, 0, 1, 1], [], []>} : vector<8x8xbf16>, vector<8x16xbf16>, vector<8x16xf32> -> vector<8x16xf32>
    %177 = arith.truncf %176 : vector<8x16xf32> to vector<8x16xbf16>
    %178 = vector.extract_strided_slice %5 {offsets = [32, 0], sizes = [16, 32], strides = [1, 1]} : vector<64x32xbf16> to vector<16x32xbf16>
    %cst_52 = arith.constant dense<0.000000e+00> : vector<8x32xf32>
    %179 = tpu.matmul %177, %178, %cst_52 {dimension_numbers = #tpu.dot_dimension_numbers<[1], [0], [0], [1], [0, 0, 1, 1], [], []>} : vector<8x16xbf16>, vector<16x32xbf16>, vector<8x32xf32> -> vector<8x32xf32>
    %180 = arith.addf %156, %179 : vector<8x32xf32>
    %181 = vector.extract_strided_slice %7 {offsets = [8, 48], sizes = [8, 16], strides = [1, 1]} : vector<16x192xf32> to vector<8x16xf32>
    %cst_53 = arith.constant 2.500000e-01 : f32
    %182 = vector.broadcast %cst_53 : f32 to vector<8x16xf32>
    %183 = arith.mulf %181, %182 : vector<8x16xf32>
    %184 = vector.extract_strided_slice %7 {offsets = [8, 112], sizes = [8, 16], strides = [1, 1]} : vector<16x192xf32> to vector<8x16xf32>
    %185 = vector.extract_strided_slice %7 {offsets = [8, 176], sizes = [8, 16], strides = [1, 1]} : vector<16x192xf32> to vector<8x16xf32>
    %186 = arith.truncf %183 : vector<8x16xf32> to vector<8x16xbf16>
    %187 = arith.truncf %184 : vector<8x16xf32> to vector<8x16xbf16>
    %cst_54 = arith.constant dense<0.000000e+00> : vector<8x8xf32>
    %188 = tpu.matmul %186, %187, %cst_54 {dimension_numbers = #tpu.dot_dimension_numbers<[1], [1], [0], [0], [0, 0, 1, 0], [], []>} : vector<8x16xbf16>, vector<8x16xbf16>, vector<8x8xf32> -> vector<8x8xf32>
    %cst_55 = arith.constant dense<0xFF800000> : vector<8xf32>
    %189 = vector.multi_reduction <maximumf>, %188, %cst_55 [1] : vector<8x8xf32> to vector<8xf32>
    %190 = vector.shape_cast %189 : vector<8xf32> to vector<8x1xf32>
    %191 = vector.broadcast %190 : vector<8x1xf32> to vector<8x8xf32>
    %192 = arith.subf %188, %191 : vector<8x8xf32>
    %193 = math.exp %192 : vector<8x8xf32>
    %cst_56 = arith.constant dense<0.000000e+00> : vector<8xf32>
    %194 = vector.multi_reduction <add>, %193, %cst_56 [1] : vector<8x8xf32> to vector<8xf32>
    %195 = vector.shape_cast %194 : vector<8xf32> to vector<8x1xf32>
    %196 = vector.broadcast %195 : vector<8x1xf32> to vector<8x8xf32>
    %197 = arith.divf %193, %196 : vector<8x8xf32>
    %198 = arith.truncf %197 : vector<8x8xf32> to vector<8x8xbf16>
    %199 = arith.truncf %185 : vector<8x16xf32> to vector<8x16xbf16>
    %cst_57 = arith.constant dense<0.000000e+00> : vector<8x16xf32>
    %200 = tpu.matmul %198, %199, %cst_57 {dimension_numbers = #tpu.dot_dimension_numbers<[1], [0], [0], [1], [0, 0, 1, 1], [], []>} : vector<8x8xbf16>, vector<8x16xbf16>, vector<8x16xf32> -> vector<8x16xf32>
    %201 = arith.truncf %200 : vector<8x16xf32> to vector<8x16xbf16>
    %202 = vector.extract_strided_slice %5 {offsets = [48, 0], sizes = [16, 32], strides = [1, 1]} : vector<64x32xbf16> to vector<16x32xbf16>
    %cst_58 = arith.constant dense<0.000000e+00> : vector<8x32xf32>
    %203 = tpu.matmul %201, %202, %cst_58 {dimension_numbers = #tpu.dot_dimension_numbers<[1], [0], [0], [1], [0, 0, 1, 1], [], []>} : vector<8x16xbf16>, vector<16x32xbf16>, vector<8x32xf32> -> vector<8x32xf32>
    %204 = arith.addf %180, %203 : vector<8x32xf32>
    %205 = vector.broadcast %6 : vector<1x32xf32> to vector<8x32xf32>
    %206 = arith.addf %204, %205 : vector<8x32xf32>
    %c8 = arith.constant 8 : index
    %c0_59 = arith.constant 0 : index
    %207 = vector.load %arg5[%c8, %c0_59] : memref<16x32xf32, #tpu.memory_space<vmem>>, vector<8x32xf32>
    tpu.vector_store %arg5[%c8, %c0_59], %206 {strides = array<i32>} : memref<16x32xf32, #tpu.memory_space<vmem>>, vector<8x32xf32>,
    return
  }
  func.func @transform_0(%arg0: i32) -> (i32, i32) {
    %c0_i32 = arith.constant 0 : i32
    %c0_i32_0 = arith.constant 0 : i32
    return %arg0, %c0_i32 : i32, i32
  }
  func.func @transform_1(%arg0: i32) -> (i32, i32) {
    %c0_i32 = arith.constant 0 : i32
    %c0_i32_0 = arith.constant 0 : i32
    %c0_i32_1 = arith.constant 0 : i32
    return %c0_i32, %c0_i32_0 : i32, i32
  }
  func.func @transform_2(%arg0: i32) -> (i32, i32) {
    %c0_i32 = arith.constant 0 : i32
    %c0_i32_0 = arith.constant 0 : i32
    %c0_i32_1 = arith.constant 0 : i32
    return %c0_i32, %c0_i32_0 : i32, i32
  }
  func.func @transform_3(%arg0: i32) -> (i32, i32) {
    %c0_i32 = arith.constant 0 : i32
    %c0_i32_0 = arith.constant 0 : i32
    %c0_i32_1 = arith.constant 0 : i32
    return %c0_i32, %c0_i32_0 : i32, i32
  }
  func.func @transform_4(%arg0: i32) -> (i32, i32) {
    %c0_i32 = arith.constant 0 : i32
    %c0_i32_0 = arith.constant 0 : i32
    return %arg0, %c0_i32 : i32, i32
  }
}

module attributes {stable_mosaic.version = 11 : i64} {
  func.func @fused_attention_kernel(%arg0: i32, %arg1: memref<16x32xf32, #tpu.memory_space<vmem>>, %arg2: memref<32x192xf32, #tpu.memory_space<vmem>>, %arg3: memref<64x32xf32, #tpu.memory_space<vmem>>, %arg4: memref<1x32xf32, #tpu.memory_space<vmem>>, %arg5: memref<16x32xf32, #tpu.memory_space<vmem>>) attributes {dimension_semantics = [#tpu.dimension_semantics<parallel>], iteration_bounds = array<i64: 1>, scalar_prefetch = 0 : i64, scratch_operands = 0 : i64, tpu.core_type = #tpu.core_type<tc>, window_params = [{transform_indices = @transform_0, window_bounds = array<i64: 16, 32>}, {pipeline_mode = #tpu.pipeline_mode<synchronous>, transform_indices = @transform_1, window_bounds = array<i64: 32, 192>}, {pipeline_mode = #tpu.pipeline_mode<synchronous>, transform_indices = @transform_2, window_bounds = array<i64: 64, 32>}, {pipeline_mode = #tpu.pipeline_mode<synchronous>, transform_indices = @transform_3, window_bounds = array<i64: 1, 32>}, {transform_indices = @transform_4, window_bounds = array<i64: 16, 32>}]} {
    %c0 = arith.constant 0 : index
    %c0_0 = arith.constant 0 : index
    %0 = vector.load %arg1[%c0, %c0_0] : memref<16x32xf32, #tpu.memory_space<vmem>>, vector<16x32xf32>
    %1 = arith.truncf %0 : vector<16x32xf32> to vector<16x32xbf16>
    %c0_1 = arith.constant 0 : index
    %c0_2 = arith.constant 0 : index
    %2 = vector.load %arg2[%c0_1, %c0_2] : memref<32x192xf32, #tpu.memory_space<vmem>>, vector<32x192xf32>
    %3 = arith.truncf %2 : vector<32x192xf32> to vector<32x192xbf16>
    %c0_3 = arith.constant 0 : index
    %c0_4 = arith.constant 0 : index
    %4 = vector.load %arg3[%c0_3, %c0_4] : memref<64x32xf32, #tpu.memory_space<vmem>>, vector<64x32xf32>
    %5 = arith.truncf %4 : vector<64x32xf32> to vector<64x32xbf16>
    %c0_5 = arith.constant 0 : index
    %c0_6 = arith.constant 0 : index
    %6 = vector.load %arg4[%c0_5, %c0_6] : memref<1x32xf32, #tpu.memory_space<vmem>>, vector<1x32xf32>
    %cst = arith.constant dense<0.000000e+00> : vector<16x192xf32>
    %7 = tpu.matmul %1, %3, %cst {dimension_numbers = #tpu.dot_dimension_numbers<[1], [0], [0], [1], [0, 0, 1, 1], [], []>} : vector<16x32xbf16>, vector<32x192xbf16>, vector<16x192xf32> -> vector<16x192xf32>
    %cst_7 = arith.constant 0.000000e+00 : f32
    %8 = vector.broadcast %cst_7 : f32 to vector<8x32xf32>
    %9 = vector.extract_strided_slice %7 {offsets = [0, 0], sizes = [8, 16], strides = [1, 1]} : vector<16x192xf32> to vector<8x16xf32>
    %cst_8 = arith.constant 2.500000e-01 : f32
    %10 = vector.broadcast %cst_8 : f32 to vector<8x16xf32>
    %11 = arith.mulf %9, %10 : vector<8x16xf32>
    %12 = vector.extract_strided_slice %7 {offsets = [0, 64], sizes = [8, 16], strides = [1, 1]} : vector<16x192xf32> to vector<8x16xf32>
    %13 = vector.extract_strided_slice %7 {offsets = [0, 128], sizes = [8, 16], strides = [1, 1]} : vector<16x192xf32> to vector<8x16xf32>
    %14 = arith.truncf %11 : vector<8x16xf32> to vector<8x16xbf16>
    %15 = arith.truncf %12 : vector<8x16xf32> to vector<8x16xbf16>
    %cst_9 = arith.constant dense<0.000000e+00> : vector<8x8xf32>
    %16 = tpu.matmul %14, %15, %cst_9 {dimension_numbers = #tpu.dot_dimension_numbers<[1], [1], [0], [0], [0, 0, 1, 0], [], []>} : vector<8x16xbf16>, vector<8x16xbf16>, vector<8x8xf32> -> vector<8x8xf32>
    %cst_10 = arith.constant dense<0xFF800000> : vector<8xf32>
    %17 = vector.multi_reduction <maximumf>, %16, %cst_10 [1] : vector<8x8xf32> to vector<8xf32>
    %18 = vector.shape_cast %17 : vector<8xf32> to vector<8x1xf32>
    %19 = vector.broadcast %18 : vector<8x1xf32> to vector<8x8xf32>
    %20 = arith.subf %16, %19 : vector<8x8xf32>
    %21 = math.exp %20 : vector<8x8xf32>
    %cst_11 = arith.constant dense<0.000000e+00> : vector<8xf32>
    %22 = vector.multi_reduction <add>, %21, %cst_11 [1] : vector<8x8xf32> to vector<8xf32>
    %23 = vector.shape_cast %22 : vector<8xf32> to vector<8x1xf32>
    %24 = vector.broadcast %23 : vector<8x1xf32> to vector<8x8xf32>
    %25 = arith.divf %21, %24 : vector<8x8xf32>
    %26 = arith.truncf %25 : vector<8x8xf32> to vector<8x8xbf16>
    %27 = arith.truncf %13 : vector<8x16xf32> to vector<8x16xbf16>
    %cst_12 = arith.constant dense<0.000000e+00> : vector<8x16xf32>
    %28 = tpu.matmul %26, %27, %cst_12 {dimension_numbers = #tpu.dot_dimension_numbers<[1], [0], [0], [1], [0, 0, 1, 1], [], []>} : vector<8x8xbf16>, vector<8x16xbf16>, vector<8x16xf32> -> vector<8x16xf32>
    %29 = arith.truncf %28 : vector<8x16xf32> to vector<8x16xbf16>
    %30 = vector.extract_strided_slice %5 {offsets = [0, 0], sizes = [16, 32], strides = [1, 1]} : vector<64x32xbf16> to vector<16x32xbf16>
    %cst_13 = arith.constant dense<0.000000e+00> : vector<8x32xf32>
    %31 = tpu.matmul %29, %30, %cst_13 {dimension_numbers = #tpu.dot_dimension_numbers<[1], [0], [0], [1], [0, 0, 1, 1], [], []>} : vector<8x16xbf16>, vector<16x32xbf16>, vector<8x32xf32> -> vector<8x32xf32>
    %32 = arith.addf %8, %31 : vector<8x32xf32>
    %33 = vector.extract_strided_slice %7 {offsets = [0, 16], sizes = [8, 16], strides = [1, 1]} : vector<16x192xf32> to vector<8x16xf32>
    %cst_14 = arith.constant 2.500000e-01 : f32
    %34 = vector.broadcast %cst_14 : f32 to vector<8x16xf32>
    %35 = arith.mulf %33, %34 : vector<8x16xf32>
    %36 = vector.extract_strided_slice %7 {offsets = [0, 80], sizes = [8, 16], strides = [1, 1]} : vector<16x192xf32> to vector<8x16xf32>
    %37 = vector.extract_strided_slice %7 {offsets = [0, 144], sizes = [8, 16], strides = [1, 1]} : vector<16x192xf32> to vector<8x16xf32>
    %38 = arith.truncf %35 : vector<8x16xf32> to vector<8x16xbf16>
    %39 = arith.truncf %36 : vector<8x16xf32> to vector<8x16xbf16>
    %cst_15 = arith.constant dense<0.000000e+00> : vector<8x8xf32>
    %40 = tpu.matmul %38, %39, %cst_15 {dimension_numbers = #tpu.dot_dimension_numbers<[1], [1], [0], [0], [0, 0, 1, 0], [], []>} : vector<8x16xbf16>, vector<8x16xbf16>, vector<8x8xf32> -> vector<8x8xf32>
    %cst_16 = arith.constant dense<0xFF800000> : vector<8xf32>
    %41 = vector.multi_reduction <maximumf>, %40, %cst_16 [1] : vector<8x8xf32> to vector<8xf32>
    %42 = vector.shape_cast %41 : vector<8xf32> to vector<8x1xf32>
    %43 = vector.broadcast %42 : vector<8x1xf32> to vector<8x8xf32>
    %44 = arith.subf %40, %43 : vector<8x8xf32>
    %45 = math.exp %44 : vector<8x8xf32>
    %cst_17 = arith.constant dense<0.000000e+00> : vector<8xf32>
    %46 = vector.multi_reduction <add>, %45, %cst_17 [1] : vector<8x8xf32> to vector<8xf32>
    %47 = vector.shape_cast %46 : vector<8xf32> to vector<8x1xf32>
    %48 = vector.broadcast %47 : vector<8x1xf32> to vector<8x8xf32>
    %49 = arith.divf %45, %48 : vector<8x8xf32>
    %50 = arith.truncf %49 : vector<8x8xf32> to vector<8x8xbf16>
    %51 = arith.truncf %37 : vector<8x16xf32> to vector<8x16xbf16>
    %cst_18 = arith.constant dense<0.000000e+00> : vector<8x16xf32>
    %52 = tpu.matmul %50, %51, %cst_18 {dimension_numbers = #tpu.dot_dimension_numbers<[1], [0], [0], [1], [0, 0, 1, 1], [], []>} : vector<8x8xbf16>, vector<8x16xbf16>, vector<8x16xf32> -> vector<8x16xf32>
    %53 = arith.truncf %52 : vector<8x16xf32> to vector<8x16xbf16>
    %54 = vector.extract_strided_slice %5 {offsets = [16, 0], sizes = [16, 32], strides = [1, 1]} : vector<64x32xbf16> to vector<16x32xbf16>
    %cst_19 = arith.constant dense<0.000000e+00> : vector<8x32xf32>
    %55 = tpu.matmul %53, %54, %cst_19 {dimension_numbers = #tpu.dot_dimension_numbers<[1], [0], [0], [1], [0, 0, 1, 1], [], []>} : vector<8x16xbf16>, vector<16x32xbf16>, vector<8x32xf32> -> vector<8x32xf32>
    %56 = arith.addf %32, %55 : vector<8x32xf32>
    %57 = vector.extract_strided_slice %7 {offsets = [0, 32], sizes = [8, 16], strides = [1, 1]} : vector<16x192xf32> to vector<8x16xf32>
    %cst_20 = arith.constant 2.500000e-01 : f32
    %58 = vector.broadcast %cst_20 : f32 to vector<8x16xf32>
    %59 = arith.mulf %57, %58 : vector<8x16xf32>
    %60 = vector.extract_strided_slice %7 {offsets = [0, 96], sizes = [8, 16], strides = [1, 1]} : vector<16x192xf32> to vector<8x16xf32>
    %61 = vector.extract_strided_slice %7 {offsets = [0, 160], sizes = [8, 16], strides = [1, 1]} : vector<16x192xf32> to vector<8x16xf32>
    %62 = arith.truncf %59 : vector<8x16xf32> to vector<8x16xbf16>
    %63 = arith.truncf %60 : vector<8x16xf32> to vector<8x16xbf16>
    %cst_21 = arith.constant dense<0.000000e+00> : vector<8x8xf32>
    %64 = tpu.matmul %62, %63, %cst_21 {dimension_numbers = #tpu.dot_dimension_numbers<[1], [1], [0], [0], [0, 0, 1, 0], [], []>} : vector<8x16xbf16>, vector<8x16xbf16>, vector<8x8xf32> -> vector<8x8xf32>
    %cst_22 = arith.constant dense<0xFF800000> : vector<8xf32>
    %65 = vector.multi_reduction <maximumf>, %64, %cst_22 [1] : vector<8x8xf32> to vector<8xf32>
    %66 = vector.shape_cast %65 : vector<8xf32> to vector<8x1xf32>
    %67 = vector.broadcast %66 : vector<8x1xf32> to vector<8x8xf32>
    %68 = arith.subf %64, %67 : vector<8x8xf32>
    %69 = math.exp %68 : vector<8x8xf32>
    %cst_23 = arith.constant dense<0.000000e+00> : vector<8xf32>
    %70 = vector.multi_reduction <add>, %69, %cst_23 [1] : vector<8x8xf32> to vector<8xf32>
    %71 = vector.shape_cast %70 : vector<8xf32> to vector<8x1xf32>
    %72 = vector.broadcast %71 : vector<8x1xf32> to vector<8x8xf32>
    %73 = arith.divf %69, %72 : vector<8x8xf32>
    %74 = arith.truncf %73 : vector<8x8xf32> to vector<8x8xbf16>
    %75 = arith.truncf %61 : vector<8x16xf32> to vector<8x16xbf16>
    %cst_24 = arith.constant dense<0.000000e+00> : vector<8x16xf32>
    %76 = tpu.matmul %74, %75, %cst_24 {dimension_numbers = #tpu.dot_dimension_numbers<[1], [0], [0], [1], [0, 0, 1, 1], [], []>} : vector<8x8xbf16>, vector<8x16xbf16>, vector<8x16xf32> -> vector<8x16xf32>
    %77 = arith.truncf %76 : vector<8x16xf32> to vector<8x16xbf16>
    %78 = vector.extract_strided_slice %5 {offsets = [32, 0], sizes = [16, 32], strides = [1, 1]} : vector<64x32xbf16> to vector<16x32xbf16>
    %cst_25 = arith.constant dense<0.000000e+00> : vector<8x32xf32>
    %79 = tpu.matmul %77, %78, %cst_25 {dimension_numbers = #tpu.dot_dimension_numbers<[1], [0], [0], [1], [0, 0, 1, 1], [], []>} : vector<8x16xbf16>, vector<16x32xbf16>, vector<8x32xf32> -> vector<8x32xf32>
    %80 = arith.addf %56, %79 : vector<8x32xf32>
    %81 = vector.extract_strided_slice %7 {offsets = [0, 48], sizes = [8, 16], strides = [1, 1]} : vector<16x192xf32> to vector<8x16xf32>
    %cst_26 = arith.constant 2.500000e-01 : f32
    %82 = vector.broadcast %cst_26 : f32 to vector<8x16xf32>
    %83 = arith.mulf %81, %82 : vector<8x16xf32>
    %84 = vector.extract_strided_slice %7 {offsets = [0, 112], sizes = [8, 16], strides = [1, 1]} : vector<16x192xf32> to vector<8x16xf32>
    %85 = vector.extract_strided_slice %7 {offsets = [0, 176], sizes = [8, 16], strides = [1, 1]} : vector<16x192xf32> to vector<8x16xf32>
    %86 = arith.truncf %83 : vector<8x16xf32> to vector<8x16xbf16>
    %87 = arith.truncf %84 : vector<8x16xf32> to vector<8x16xbf16>
    %cst_27 = arith.constant dense<0.000000e+00> : vector<8x8xf32>
    %88 = tpu.matmul %86, %87, %cst_27 {dimension_numbers = #tpu.dot_dimension_numbers<[1], [1], [0], [0], [0, 0, 1, 0], [], []>} : vector<8x16xbf16>, vector<8x16xbf16>, vector<8x8xf32> -> vector<8x8xf32>
    %cst_28 = arith.constant dense<0xFF800000> : vector<8xf32>
    %89 = vector.multi_reduction <maximumf>, %88, %cst_28 [1] : vector<8x8xf32> to vector<8xf32>
    %90 = vector.shape_cast %89 : vector<8xf32> to vector<8x1xf32>
    %91 = vector.broadcast %90 : vector<8x1xf32> to vector<8x8xf32>
    %92 = arith.subf %88, %91 : vector<8x8xf32>
    %93 = math.exp %92 : vector<8x8xf32>
    %cst_29 = arith.constant dense<0.000000e+00> : vector<8xf32>
    %94 = vector.multi_reduction <add>, %93, %cst_29 [1] : vector<8x8xf32> to vector<8xf32>
    %95 = vector.shape_cast %94 : vector<8xf32> to vector<8x1xf32>
    %96 = vector.broadcast %95 : vector<8x1xf32> to vector<8x8xf32>
    %97 = arith.divf %93, %96 : vector<8x8xf32>
    %98 = arith.truncf %97 : vector<8x8xf32> to vector<8x8xbf16>
    %99 = arith.truncf %85 : vector<8x16xf32> to vector<8x16xbf16>
    %cst_30 = arith.constant dense<0.000000e+00> : vector<8x16xf32>
    %100 = tpu.matmul %98, %99, %cst_30 {dimension_numbers = #tpu.dot_dimension_numbers<[1], [0], [0], [1], [0, 0, 1, 1], [], []>} : vector<8x8xbf16>, vector<8x16xbf16>, vector<8x16xf32> -> vector<8x16xf32>
    %101 = arith.truncf %100 : vector<8x16xf32> to vector<8x16xbf16>
    %102 = vector.extract_strided_slice %5 {offsets = [48, 0], sizes = [16, 32], strides = [1, 1]} : vector<64x32xbf16> to vector<16x32xbf16>
    %cst_31 = arith.constant dense<0.000000e+00> : vector<8x32xf32>
    %103 = tpu.matmul %101, %102, %cst_31 {dimension_numbers = #tpu.dot_dimension_numbers<[1], [0], [0], [1], [0, 0, 1, 1], [], []>} : vector<8x16xbf16>, vector<16x32xbf16>, vector<8x32xf32> -> vector<8x32xf32>
    %104 = arith.addf %80, %103 : vector<8x32xf32>
    %105 = vector.broadcast %6 : vector<1x32xf32> to vector<8x32xf32>
    %106 = arith.addf %104, %105 : vector<8x32xf32>
    %c0_32 = arith.constant 0 : index
    %c0_33 = arith.constant 0 : index
    %107 = vector.load %arg5[%c0_32, %c0_33] : memref<16x32xf32, #tpu.memory_space<vmem>>, vector<8x32xf32>
    tpu.vector_store %arg5[%c0_32, %c0_33], %106 {strides = array<i32>} : memref<16x32xf32, #tpu.memory_space<vmem>>, vector<8x32xf32>,
    %cst_34 = arith.constant 0.000000e+00 : f32
    %108 = vector.broadcast %cst_34 : f32 to vector<8x32xf32>
    %109 = vector.extract_strided_slice %7 {offsets = [8, 0], sizes = [8, 16], strides = [1, 1]} : vector<16x192xf32> to vector<8x16xf32>
    %cst_35 = arith.constant 2.500000e-01 : f32
    %110 = vector.broadcast %cst_35 : f32 to vector<8x16xf32>
    %111 = arith.mulf %109, %110 : vector<8x16xf32>
    %112 = vector.extract_strided_slice %7 {offsets = [8, 64], sizes = [8, 16], strides = [1, 1]} : vector<16x192xf32> to vector<8x16xf32>
    %113 = vector.extract_strided_slice %7 {offsets = [8, 128], sizes = [8, 16], strides = [1, 1]} : vector<16x192xf32> to vector<8x16xf32>
    %114 = arith.truncf %111 : vector<8x16xf32> to vector<8x16xbf16>
    %115 = arith.truncf %112 : vector<8x16xf32> to vector<8x16xbf16>
    %cst_36 = arith.constant dense<0.000000e+00> : vector<8x8xf32>
    %116 = tpu.matmul %114, %115, %cst_36 {dimension_numbers = #tpu.dot_dimension_numbers<[1], [1], [0], [0], [0, 0, 1, 0], [], []>} : vector<8x16xbf16>, vector<8x16xbf16>, vector<8x8xf32> -> vector<8x8xf32>
    %cst_37 = arith.constant dense<0xFF800000> : vector<8xf32>
    %117 = vector.multi_reduction <maximumf>, %116, %cst_37 [1] : vector<8x8xf32> to vector<8xf32>
    %118 = vector.shape_cast %117 : vector<8xf32> to vector<8x1xf32>
    %119 = vector.broadcast %118 : vector<8x1xf32> to vector<8x8xf32>
    %120 = arith.subf %116, %119 : vector<8x8xf32>
    %121 = math.exp %120 : vector<8x8xf32>
    %cst_38 = arith.constant dense<0.000000e+00> : vector<8xf32>
    %122 = vector.multi_reduction <add>, %121, %cst_38 [1] : vector<8x8xf32> to vector<8xf32>
    %123 = vector.shape_cast %122 : vector<8xf32> to vector<8x1xf32>
    %124 = vector.broadcast %123 : vector<8x1xf32> to vector<8x8xf32>
    %125 = arith.divf %121, %124 : vector<8x8xf32>
    %126 = arith.truncf %125 : vector<8x8xf32> to vector<8x8xbf16>
    %127 = arith.truncf %113 : vector<8x16xf32> to vector<8x16xbf16>
    %cst_39 = arith.constant dense<0.000000e+00> : vector<8x16xf32>
    %128 = tpu.matmul %126, %127, %cst_39 {dimension_numbers = #tpu.dot_dimension_numbers<[1], [0], [0], [1], [0, 0, 1, 1], [], []>} : vector<8x8xbf16>, vector<8x16xbf16>, vector<8x16xf32> -> vector<8x16xf32>
    %129 = arith.truncf %128 : vector<8x16xf32> to vector<8x16xbf16>
    %130 = vector.extract_strided_slice %5 {offsets = [0, 0], sizes = [16, 32], strides = [1, 1]} : vector<64x32xbf16> to vector<16x32xbf16>
    %cst_40 = arith.constant dense<0.000000e+00> : vector<8x32xf32>
    %131 = tpu.matmul %129, %130, %cst_40 {dimension_numbers = #tpu.dot_dimension_numbers<[1], [0], [0], [1], [0, 0, 1, 1], [], []>} : vector<8x16xbf16>, vector<16x32xbf16>, vector<8x32xf32> -> vector<8x32xf32>
    %132 = arith.addf %108, %131 : vector<8x32xf32>
    %133 = vector.extract_strided_slice %7 {offsets = [8, 16], sizes = [8, 16], strides = [1, 1]} : vector<16x192xf32> to vector<8x16xf32>
    %cst_41 = arith.constant 2.500000e-01 : f32
    %134 = vector.broadcast %cst_41 : f32 to vector<8x16xf32>
    %135 = arith.mulf %133, %134 : vector<8x16xf32>
    %136 = vector.extract_strided_slice %7 {offsets = [8, 80], sizes = [8, 16], strides = [1, 1]} : vector<16x192xf32> to vector<8x16xf32>
    %137 = vector.extract_strided_slice %7 {offsets = [8, 144], sizes = [8, 16], strides = [1, 1]} : vector<16x192xf32> to vector<8x16xf32>
    %138 = arith.truncf %135 : vector<8x16xf32> to vector<8x16xbf16>
    %139 = arith.truncf %136 : vector<8x16xf32> to vector<8x16xbf16>
    %cst_42 = arith.constant dense<0.000000e+00> : vector<8x8xf32>
    %140 = tpu.matmul %138, %139, %cst_42 {dimension_numbers = #tpu.dot_dimension_numbers<[1], [1], [0], [0], [0, 0, 1, 0], [], []>} : vector<8x16xbf16>, vector<8x16xbf16>, vector<8x8xf32> -> vector<8x8xf32>
    %cst_43 = arith.constant dense<0xFF800000> : vector<8xf32>
    %141 = vector.multi_reduction <maximumf>, %140, %cst_43 [1] : vector<8x8xf32> to vector<8xf32>
    %142 = vector.shape_cast %141 : vector<8xf32> to vector<8x1xf32>
    %143 = vector.broadcast %142 : vector<8x1xf32> to vector<8x8xf32>
    %144 = arith.subf %140, %143 : vector<8x8xf32>
    %145 = math.exp %144 : vector<8x8xf32>
    %cst_44 = arith.constant dense<0.000000e+00> : vector<8xf32>
    %146 = vector.multi_reduction <add>, %145, %cst_44 [1] : vector<8x8xf32> to vector<8xf32>
    %147 = vector.shape_cast %146 : vector<8xf32> to vector<8x1xf32>
    %148 = vector.broadcast %147 : vector<8x1xf32> to vector<8x8xf32>
    %149 = arith.divf %145, %148 : vector<8x8xf32>
    %150 = arith.truncf %149 : vector<8x8xf32> to vector<8x8xbf16>
    %151 = arith.truncf %137 : vector<8x16xf32> to vector<8x16xbf16>
    %cst_45 = arith.constant dense<0.000000e+00> : vector<8x16xf32>
    %152 = tpu.matmul %150, %151, %cst_45 {dimension_numbers = #tpu.dot_dimension_numbers<[1], [0], [0], [1], [0, 0, 1, 1], [], []>} : vector<8x8xbf16>, vector<8x16xbf16>, vector<8x16xf32> -> vector<8x16xf32>
    %153 = arith.truncf %152 : vector<8x16xf32> to vector<8x16xbf16>
    %154 = vector.extract_strided_slice %5 {offsets = [16, 0], sizes = [16, 32], strides = [1, 1]} : vector<64x32xbf16> to vector<16x32xbf16>
    %cst_46 = arith.constant dense<0.000000e+00> : vector<8x32xf32>
    %155 = tpu.matmul %153, %154, %cst_46 {dimension_numbers = #tpu.dot_dimension_numbers<[1], [0], [0], [1], [0, 0, 1, 1], [], []>} : vector<8x16xbf16>, vector<16x32xbf16>, vector<8x32xf32> -> vector<8x32xf32>
    %156 = arith.addf %132, %155 : vector<8x32xf32>
    %157 = vector.extract_strided_slice %7 {offsets = [8, 32], sizes = [8, 16], strides = [1, 1]} : vector<16x192xf32> to vector<8x16xf32>
    %cst_47 = arith.constant 2.500000e-01 : f32
    %158 = vector.broadcast %cst_47 : f32 to vector<8x16xf32>
    %159 = arith.mulf %157, %158 : vector<8x16xf32>
    %160 = vector.extract_strided_slice %7 {offsets = [8, 96], sizes = [8, 16], strides = [1, 1]} : vector<16x192xf32> to vector<8x16xf32>
    %161 = vector.extract_strided_slice %7 {offsets = [8, 160], sizes = [8, 16], strides = [1, 1]} : vector<16x192xf32> to vector<8x16xf32>
    %162 = arith.truncf %159 : vector<8x16xf32> to vector<8x16xbf16>
    %163 = arith.truncf %160 : vector<8x16xf32> to vector<8x16xbf16>
    %cst_48 = arith.constant dense<0.000000e+00> : vector<8x8xf32>
    %164 = tpu.matmul %162, %163, %cst_48 {dimension_numbers = #tpu.dot_dimension_numbers<[1], [1], [0], [0], [0, 0, 1, 0], [], []>} : vector<8x16xbf16>, vector<8x16xbf16>, vector<8x8xf32> -> vector<8x8xf32>
    %cst_49 = arith.constant dense<0xFF800000> : vector<8xf32>
    %165 = vector.multi_reduction <maximumf>, %164, %cst_49 [1] : vector<8x8xf32> to vector<8xf32>
    %166 = vector.shape_cast %165 : vector<8xf32> to vector<8x1xf32>
    %167 = vector.broadcast %166 : vector<8x1xf32> to vector<8x8xf32>
    %168 = arith.subf %164, %167 : vector<8x8xf32>
    %169 = math.exp %168 : vector<8x8xf32>
    %cst_50 = arith.constant dense<0.000000e+00> : vector<8xf32>
    %170 = vector.multi_reduction <add>, %169, %cst_50 [1] : vector<8x8xf32> to vector<8xf32>
    %171 = vector.shape_cast %170 : vector<8xf32> to vector<8x1xf32>
    %172 = vector.broadcast %171 : vector<8x1xf32> to vector<8x8xf32>
    %173 = arith.divf %169, %172 : vector<8x8xf32>
    %174 = arith.truncf %173 : vector<8x8xf32> to vector<8x8xbf16>
    %175 = arith.truncf %161 : vector<8x16xf32> to vector<8x16xbf16>
    %cst_51 = arith.constant dense<0.000000e+00> : vector<8x16xf32>
    %176 = tpu.matmul %174, %175, %cst_51 {dimension_numbers = #tpu.dot_dimension_numbers<[1], [0], [0], [1], [0, 0, 1, 1], [], []>} : vector<8x8xbf16>, vector<8x16xbf16>, vector<8x16xf32> -> vector<8x16xf32>
    %177 = arith.truncf %176 : vector<8x16xf32> to vector<8x16xbf16>
    %178 = vector.extract_strided_slice %5 {offsets = [32, 0], sizes = [16, 32], strides = [1, 1]} : vector<64x32xbf16> to vector<16x32xbf16>
    %cst_52 = arith.constant dense<0.000000e+00> : vector<8x32xf32>
    %179 = tpu.matmul %177, %178, %cst_52 {dimension_numbers = #tpu.dot_dimension_numbers<[1], [0], [0], [1], [0, 0, 1, 1], [], []>} : vector<8x16xbf16>, vector<16x32xbf16>, vector<8x32xf32> -> vector<8x32xf32>
    %180 = arith.addf %156, %179 : vector<8x32xf32>
    %181 = vector.extract_strided_slice %7 {offsets = [8, 48], sizes = [8, 16], strides = [1, 1]} : vector<16x192xf32> to vector<8x16xf32>
    %cst_53 = arith.constant 2.500000e-01 : f32
    %182 = vector.broadcast %cst_53 : f32 to vector<8x16xf32>
    %183 = arith.mulf %181, %182 : vector<8x16xf32>
    %184 = vector.extract_strided_slice %7 {offsets = [8, 112], sizes = [8, 16], strides = [1, 1]} : vector<16x192xf32> to vector<8x16xf32>
    %185 = vector.extract_strided_slice %7 {offsets = [8, 176], sizes = [8, 16], strides = [1, 1]} : vector<16x192xf32> to vector<8x16xf32>
    %186 = arith.truncf %183 : vector<8x16xf32> to vector<8x16xbf16>
    %187 = arith.truncf %184 : vector<8x16xf32> to vector<8x16xbf16>
    %cst_54 = arith.constant dense<0.000000e+00> : vector<8x8xf32>
    %188 = tpu.matmul %186, %187, %cst_54 {dimension_numbers = #tpu.dot_dimension_numbers<[1], [1], [0], [0], [0, 0, 1, 0], [], []>} : vector<8x16xbf16>, vector<8x16xbf16>, vector<8x8xf32> -> vector<8x8xf32>
    %cst_55 = arith.constant dense<0xFF800000> : vector<8xf32>
    %189 = vector.multi_reduction <maximumf>, %188, %cst_55 [1] : vector<8x8xf32> to vector<8xf32>
    %190 = vector.shape_cast %189 : vector<8xf32> to vector<8x1xf32>
    %191 = vector.broadcast %190 : vector<8x1xf32> to vector<8x8xf32>
    %192 = arith.subf %188, %191 : vector<8x8xf32>
    %193 = math.exp %192 : vector<8x8xf32>
    %cst_56 = arith.constant dense<0.000000e+00> : vector<8xf32>
    %194 = vector.multi_reduction <add>, %193, %cst_56 [1] : vector<8x8xf32> to vector<8xf32>
    %195 = vector.shape_cast %194 : vector<8xf32> to vector<8x1xf32>
    %196 = vector.broadcast %195 : vector<8x1xf32> to vector<8x8xf32>
    %197 = arith.divf %193, %196 : vector<8x8xf32>
    %198 = arith.truncf %197 : vector<8x8xf32> to vector<8x8xbf16>
    %199 = arith.truncf %185 : vector<8x16xf32> to vector<8x16xbf16>
    %cst_57 = arith.constant dense<0.000000e+00> : vector<8x16xf32>
    %200 = tpu.matmul %198, %199, %cst_57 {dimension_numbers = #tpu.dot_dimension_numbers<[1], [0], [0], [1], [0, 0, 1, 1], [], []>} : vector<8x8xbf16>, vector<8x16xbf16>, vector<8x16xf32> -> vector<8x16xf32>
    %201 = arith.truncf %200 : vector<8x16xf32> to vector<8x16xbf16>
    %202 = vector.extract_strided_slice %5 {offsets = [48, 0], sizes = [16, 32], strides = [1, 1]} : vector<64x32xbf16> to vector<16x32xbf16>
    %cst_58 = arith.constant dense<0.000000e+00> : vector<8x32xf32>
    %203 = tpu.matmul %201, %202, %cst_58 {dimension_numbers = #tpu.dot_dimension_numbers<[1], [0], [0], [1], [0, 0, 1, 1], [], []>} : vector<8x16xbf16>, vector<16x32xbf16>, vector<8x32xf32> -> vector<8x32xf32>
    %204 = arith.addf %180, %203 : vector<8x32xf32>
    %205 = vector.broadcast %6 : vector<1x32xf32> to vector<8x32xf32>
    %206 = arith.addf %204, %205 : vector<8x32xf32>
    %c8 = arith.constant 8 : index
    %c0_59 = arith.constant 0 : index
    %207 = vector.load %arg5[%c8, %c0_59] : memref<16x32xf32, #tpu.memory_space<vmem>>, vector<8x32xf32>
    tpu.vector_store %arg5[%c8, %c0_59], %206 {strides = array<i32>} : memref<16x32xf32, #tpu.memory_space<vmem>>, vector<8x32xf32>,
    return
  }
  func.func @transform_0(%arg0: i32) -> (i32, i32) {
    %c0_i32 = arith.constant 0 : i32
    %c0_i32_0 = arith.constant 0 : i32
    return %arg0, %c0_i32 : i32, i32
  }
  func.func @transform_1(%arg0: i32) -> (i32, i32) {
    %c0_i32 = arith.constant 0 : i32
    %c0_i32_0 = arith.constant 0 : i32
    %c0_i32_1 = arith.constant 0 : i32
    return %c0_i32, %c0_i32_0 : i32, i32
  }
  func.func @transform_2(%arg0: i32) -> (i32, i32) {
    %c0_i32 = arith.constant 0 : i32
    %c0_i32_0 = arith.constant 0 : i32
    %c0_i32_1 = arith.constant 0 : i32
    return %c0_i32, %c0_i32_0 : i32, i32
  }
  func.func @transform_3(%arg0: i32) -> (i32, i32) {
    %c0_i32 = arith.constant 0 : i32
    %c0_i32_0 = arith.constant 0 : i32
    %c0_i32_1 = arith.constant 0 : i32
    return %c0_i32, %c0_i32_0 : i32, i32
  }
  func.func @transform_4(%arg0: i32) -> (i32, i32) {
    %c0_i32 = arith.constant 0 : i32
    %c0_i32_0 = arith.constant 0 : i32
    return %arg0, %c0_i32 : i32, i32
  }
}

</mosaic_0001>

<llo_original>
// kernel: tpu_custom_call.1
$region0: #{tpu_custom_call.1}
  #allocation0 [shape = 'u32[]', space=smem, size = 0x4, offset = 0x4, fixed_abs, tag = 'smem constant byte address 0x4 - core index']
  #allocation1 [shape = 'u32[72,128]{1,0:T(1,128)}', space=vmem, size = 0x9000, scoped, tag = 'internal scratch']
  %s0 = inlined_call_operand.vmem [shape: f32[16,32], index: 0, kind: input, shape index: {}]
  %s1 = inlined_call_operand.vmem [shape: f32[32,192], index: 1, kind: input, shape index: {}]
  %s2 = inlined_call_operand.vmem [shape: f32[64,32], index: 2, kind: input, shape index: {}]
  %s3 = inlined_call_operand.vmem [shape: f32[1,32], index: 3, kind: input, shape index: {}]
  %s4 = inlined_call_operand.hbm [shape: f32[16,32], index: 4, kind: output, shape index: {}]
  %s5 = sld [smem:[#allocation0]]
  $region26: #{tpu_custom_call.1} parent=0
    _
  %s7 = ssub.s32 1, %s5
  %s8 = scalar_select 0, %s7, %s5
  $region1: #{tpu_custom_call.1} parent=0
    #allocation2 [shape = 'u8[8192]{0}', space=vmem, size = 0x2000, scoped, tag = 'output window, operand 0, single buffered']
    #allocation3 [shape = 's32[1]{0}', space=sflag, size = 0x4, scoped, tag = 'scoped memory for tpu_custom_call.1']
    %9 = vsyncpa [#allocation3], 0
    // Predicated region
    $region2: #{tpu_custom_call.1} parent=1 // pred_check
      _
    $region3: #{tpu_custom_call.1} parent=1 // pred_check_branch
      %11 = sbr.rel (0) target = $region5
    $region4: #{tpu_custom_call.1} parent=1 // pred_region
      _
    $region5: #{tpu_custom_call.1} parent=1 // pred_fallthru
      _
    // Predicated region
    $region6: #{tpu_custom_call.1} parent=1 // pred_check
      _
    $region7: #{tpu_custom_call.1} parent=1 // pred_check_branch
      %13 = sbr.rel (0) target = $region9
    $region8: #{tpu_custom_call.1} parent=1 // pred_region
      _
    $region9: #{tpu_custom_call.1} parent=1 // pred_fallthru
      _
    // Predicated region
    $region10: #{tpu_custom_call.1} parent=1 // pred_check
      _
    $region11: #{tpu_custom_call.1} parent=1 // pred_check_branch
      %15 = sbr.rel (0) target = $region13
    $region12: #{tpu_custom_call.1} parent=1 // pred_region
      _
    $region13: #{tpu_custom_call.1} parent=1 // pred_fallthru
      _
    // Predicated region
    $region14: #{tpu_custom_call.1} parent=1 // pred_check
      _
    $region15: #{tpu_custom_call.1} parent=1 // pred_check_branch
      %17 = sbr.rel (0) target = $region17
    $region16: #{tpu_custom_call.1} parent=1 // pred_region
      _
    $region17: #{tpu_custom_call.1} parent=1 // pred_fallthru
      _
    %v19 = vld [vmem:[%s0] sm:$0xff]
    %v20 = vld [vmem:[%s0 + $0x8] sm:$0xff]
    %v21 = vpack.c.bf16 %v20, %v19
    %v22 = vld [vmem:[%s1] sm:$0xff]
    %v23 = vld [vmem:[%s1 + $0x8] sm:$0xff]
    %v24 = vld [vmem:[%s1 + $0x10] sm:$0xff]
    %v25 = vld [vmem:[%s1 + $0x18] sm:$0xff]
    %v26 = vld [vmem:[%s1 + $0x20] sm:$0xff]
    %v27 = vld [vmem:[%s1 + $0x28] sm:$0xff]
    %v28 = vld [vmem:[%s1 + $0x30] sm:$0xff]
    %v29 = vld [vmem:[%s1 + $0x38] sm:$0xff]
    %v30 = vpack.c.bf16 %v24, %v22
    %v31 = vpack.c.bf16 %v25, %v23
    %v32 = vpack.c.bf16 %v28, %v26
    %v33 = vpack.c.bf16 %v29, %v27
    %v34 = vld [vmem:[%s2] sm:$0xff]
    %v35 = vld [vmem:[%s2 + $0x8] sm:$0xff]
    %v36 = vld [vmem:[%s2 + $0x10] sm:$0xff]
    %v37 = vld [vmem:[%s2 + $0x18] sm:$0xff]
    %v38 = vld [vmem:[%s2 + $0x20] sm:$0xff]
    %v39 = vld [vmem:[%s2 + $0x28] sm:$0xff]
    %v40 = vld [vmem:[%s2 + $0x30] sm:$0xff]
    %v41 = vld [vmem:[%s2 + $0x38] sm:$0xff]
    %v42 = vpack.c.bf16 %v34, %v34
    %v43 = vpack.c.bf16 %v35, %v35
    %v44 = vpack.c.bf16 %v36, %v36
    %v45 = vpack.c.bf16 %v37, %v37
    %v46 = vpack.c.bf16 %v38, %v38
    %v47 = vpack.c.bf16 %v39, %v39
    %v48 = vpack.c.bf16 %v40, %v40
    %v49 = vpack.c.bf16 %v41, %v41
    %v50 = vld [vmem:[%s3] sm:$0x1]
    %vm51 = vcmask 261120
    %v53 = vsel %vm51, %v21, 0
    %55 = vmatpush.bf16.msra.mxu0 0
    %56 = vmatpush.bf16.msra.mxu0 0
    %57 = vmatpush.bf16.msra.mxu0 0
    %58 = vmatpush.bf16.msra.mxu0 0
    %59 = vmatpush.bf16.msra.mxu0 0
    %60 = vmatpush.bf16.msra.mxu0 0
    %61 = vmatpush.bf16.msra.mxu0 %v32
    %62 = vmatpush.bf16.msra.mxu0 %v30
    %63 = vmatmul.bf16.gmra.mxu0 %v53
    %v64 = vpop.f32.mrf.mxu0
    %v65 = vadd.f32 0.0, %v64
    %v66 = vpop.f32.mrf.mxu0
    %v67 = vadd.f32 0.0, %v66
    %68 = vdwg.mxu0
    %69 = vmatpush.bf16.msra.mxu0 0
    %70 = vmatpush.bf16.msra.mxu0 0
    %71 = vmatpush.bf16.msra.mxu0 0
    %72 = vmatpush.bf16.msra.mxu0 0
    %73 = vmatpush.bf16.msra.mxu0 0
    %74 = vmatpush.bf16.msra.mxu0 0
    %75 = vmatpush.bf16.msra.mxu0 %v33
    %76 = vmatpush.bf16.msra.mxu0 %v31
    %77 = vmatmul.bf16.gmra.mxu0 %v53
    %v78 = vpop.f32.mrf.mxu0
    %v79 = vadd.f32 0.0, %v78
    %v80 = vpop.f32.mrf.mxu0
    %v81 = vadd.f32 0.0, %v80
    %82 = vdwg.mxu0
    %v83 = vmul.f32 %v65, 0.25
    %v84 = vpack.c.bf16 %v83, %v83
    %v85 = vpack.c.bf16 %v65, %v65
    %87 = vrot.lane.b32.xlu0 %v85, 64
    %v88 = vpop.permute.xlu0 %87
    %vm89 = vcmask 130048
    %v91 = vsel %vm89, %v84, 0
    %v94 = vsel %vm89, %v88, 0
    %96 = vmatpush.bf16.xpose.msra.mxu0 0
    %97 = vmatpush.bf16.xpose.msra.mxu0 0
    %98 = vmatpush.bf16.xpose.msra.mxu0 0
    %99 = vmatpush.bf16.xpose.msra.mxu0 0
    %100 = vmatpush.bf16.xpose.msra.mxu0 0
    %101 = vmatpush.bf16.xpose.msra.mxu0 0
    %102 = vmatpush.bf16.xpose.msra.mxu0 0
    %103 = vmatpush.bf16.xpose.msra.mxu0 %v94
    %104 = vmatmul.bf16.gmra.mxu0 %v91
    %v105 = vpop.f32.mrf.mxu0
    %v106 = vadd.f32 0.0, %v105
    %v107 = vpop.f32.mrf.mxu0
    %108 = vdwg.mxu0
    %vm109 = vcmask 64512
    %v110 = vsel %vm109, %v106, -inf
    %111 = vmax.xlane.f32.xlu0 %v110
    %v112 = vpop.xlane.xlu0 %111
    %v113 = vsub.f32 %v106, %v112
    %v114 = vmul.f32 %v113, 1.442695
    %v115 = vpow.pop %v114
    %v116 = vsel %vm109, %v115, 0.0
    %117 = vadd.xlane.f32.xlu0 %v116
    %v118 = vpop.xlane.xlu0 %117
    %v119 = vrcp.pop %v118
    %v120 = vmul.f32 %v118, %v119
    %v121 = vsub.f32 1.0, %v120
    %v122 = vmul.f32 %v119, %v121
    %v123 = vadd.f32 %v119, %v122
    %vm124 = vweird.f32 %v118
    %vm125 = vweird.f32 %v119
    %vm126 = vmor %vm124, %vm125
    %v127 = vsel %vm126, %v119, %v123
    %v128 = vand.u32 2147483647, %v118
    %vm129 = vcmp.eq.f32.partialorder %v128, 8.507059e+37
    %v130 = vand.u32 %v118, 2147483648
    %v131 = vor.u32 1.1754944e-38, %v130
    %v132 = vsel %vm129, %v131, %v127
    %v133 = vmul.f32 %v115, %v132
    %v134 = vpack.c.bf16 %v133, %v133
    %v135 = vpack.c.bf16 %v79, %v79
    %v137 = vsel %vm109, %v134, 0
    %vm139 = vcmask 1043456
    %v141 = vsel %vm139, %v135, 0
    %143 = vmatpush.bf16.msra.mxu0 0
    %144 = vmatpush.bf16.msra.mxu0 0
    %145 = vmatpush.bf16.msra.mxu0 0
    %146 = vmatpush.bf16.msra.mxu0 0
    %147 = vmatpush.bf16.msra.mxu0 0
    %148 = vmatpush.bf16.msra.mxu0 0
    %149 = vmatpush.bf16.msra.mxu0 0
    %150 = vmatpush.bf16.msra.mxu0 %v141
    %151 = vmatmul.bf16.gmra.mxu0 %v137
    %v152 = vpop.f32.mrf.mxu0
    %v153 = vadd.f32 0.0, %v152
    %v154 = vpop.f32.mrf.mxu0
    %155 = vdwg.mxu0
    %v156 = vpack.c.bf16 %v153, %v153
    %158 = vrot.lane.b32.xlu0 %v84, 112
    %v159 = vpop.permute.xlu0 %158
    %160 = vrot.lane.b32.xlu0 %v85, 48
    %v161 = vpop.permute.xlu0 %160
    %v163 = vsel %vm89, %v159, 0
    %v166 = vsel %vm89, %v161, 0
    %168 = vmatpush.bf16.xpose.msra.mxu0 0
    %169 = vmatpush.bf16.xpose.msra.mxu0 0
    %170 = vmatpush.bf16.xpose.msra.mxu0 0
    %171 = vmatpush.bf16.xpose.msra.mxu0 0
    %172 = vmatpush.bf16.xpose.msra.mxu0 0
    %173 = vmatpush.bf16.xpose.msra.mxu0 0
    %174 = vmatpush.bf16.xpose.msra.mxu0 0
    %175 = vmatpush.bf16.xpose.msra.mxu0 %v166
    %176 = vmatmul.bf16.gmra.mxu0 %v163
    %v177 = vpop.f32.mrf.mxu0
    %v178 = vadd.f32 0.0, %v177
    %v179 = vpop.f32.mrf.mxu0
    %180 = vdwg.mxu0
    %v181 = vsel %vm109, %v178, -inf
    %182 = vmax.xlane.f32.xlu0 %v181
    %v183 = vpop.xlane.xlu0 %182
    %v184 = vsub.f32 %v178, %v183
    %v185 = vmul.f32 %v184, 1.442695
    %v186 = vpow.pop %v185
    %v187 = vsel %vm109, %v186, 0.0
    %188 = vadd.xlane.f32.xlu0 %v187
    %v189 = vpop.xlane.xlu0 %188
    %v190 = vrcp.pop %v189
    %v191 = vmul.f32 %v189, %v190
    %v192 = vsub.f32 1.0, %v191
    %v193 = vmul.f32 %v190, %v192
    %v194 = vadd.f32 %v190, %v193
    %vm195 = vweird.f32 %v189
    %vm196 = vweird.f32 %v190
    %vm197 = vmor %vm195, %vm196
    %v198 = vsel %vm197, %v190, %v194
    %v199 = vand.u32 2147483647, %v189
    %vm200 = vcmp.eq.f32.partialorder %v199, 8.507059e+37
    %v201 = vand.u32 %v189, 2147483648
    %v202 = vor.u32 1.1754944e-38, %v201
    %v203 = vsel %vm200, %v202, %v198
    %v204 = vmul.f32 %v186, %v203
    %v205 = vpack.c.bf16 %v204, %v204
    %207 = vrot.lane.b32.xlu0 %v135, 112
    %v208 = vpop.permute.xlu0 %207
    %v210 = vsel %vm109, %v205, 0
    %v213 = vsel %vm139, %v208, 0
    %215 = vmatpush.bf16.msra.mxu0 0
    %216 = vmatpush.bf16.msra.mxu0 0
    %217 = vmatpush.bf16.msra.mxu0 0
    %218 = vmatpush.bf16.msra.mxu0 0
    %219 = vmatpush.bf16.msra.mxu0 0
    %220 = vmatpush.bf16.msra.mxu0 0
    %221 = vmatpush.bf16.msra.mxu0 0
    %222 = vmatpush.bf16.msra.mxu0 %v213
    %223 = vmatmul.bf16.gmra.mxu0 %v210
    %v224 = vpop.f32.mrf.mxu0
    %v225 = vadd.f32 0.0, %v224
    %v226 = vpop.f32.mrf.mxu0
    %227 = vdwg.mxu0
    %v228 = vpack.c.bf16 %v225, %v225
    %v231 = vunpack.c.l.b16 %v44
    %v232 = vunpack.c.l.b16 %v45
    %v233 = vpack.c.b16 %v232, %v231
    %v236 = vsel %vm89, %v228, 0
    %238 = vmatpush.bf16.msra.mxu0 0
    %239 = vmatpush.bf16.msra.mxu0 0
    %240 = vmatpush.bf16.msra.mxu0 0
    %241 = vmatpush.bf16.msra.mxu0 0
    %242 = vmatpush.bf16.msra.mxu0 0
    %243 = vmatpush.bf16.msra.mxu0 0
    %244 = vmatpush.bf16.msra.mxu0 0
    %245 = vmatpush.bf16.msra.mxu0 %v233
    %246 = vmatmul.bf16.gmra.mxu0 %v236
    %v247 = vpop.f32.mrf.mxu0
    %v248 = vadd.f32 0.0, %v247
    %v249 = vpop.f32.mrf.mxu0
    %250 = vdwg.mxu0
    %v253 = vunpack.c.l.b16 %v42
    %v254 = vunpack.c.l.b16 %v43
    %v255 = vpack.c.b16 %v254, %v253
    %v258 = vsel %vm89, %v156, 0
    %260 = vmatpush.bf16.msra.mxu0 0
    %261 = vmatpush.bf16.msra.mxu0 0
    %262 = vmatpush.bf16.msra.mxu0 0
    %263 = vmatpush.bf16.msra.mxu0 0
    %264 = vmatpush.bf16.msra.mxu0 0
    %265 = vmatpush.bf16.msra.mxu0 0
    %266 = vmatpush.bf16.msra.mxu0 0
    %267 = vmatpush.bf16.msra.mxu0 %v255
    %268 = vmatmul.bf16.gmra.mxu0 %v258
    %v269 = vpop.f32.mrf.mxu0
    %v270 = vadd.f32 %v248, %v269
    %v271 = vpop.f32.mrf.mxu0
    %272 = vdwg.mxu0
    %273 = vrot.lane.b32.xlu0 %v84, 96
    %v274 = vpop.permute.xlu0 %273
    %275 = vrot.lane.b32.xlu0 %v85, 32
    %v276 = vpop.permute.xlu0 %275
    %v278 = vsel %vm89, %v274, 0
    %v281 = vsel %vm89, %v276, 0
    %283 = vmatpush.bf16.xpose.msra.mxu0 0
    %284 = vmatpush.bf16.xpose.msra.mxu0 0
    %285 = vmatpush.bf16.xpose.msra.mxu0 0
    %286 = vmatpush.bf16.xpose.msra.mxu0 0
    %287 = vmatpush.bf16.xpose.msra.mxu0 0
    %288 = vmatpush.bf16.xpose.msra.mxu0 0
    %289 = vmatpush.bf16.xpose.msra.mxu0 0
    %290 = vmatpush.bf16.xpose.msra.mxu0 %v281
    %291 = vmatmul.bf16.gmra.mxu0 %v278
    %v292 = vpop.f32.mrf.mxu0
    %v293 = vadd.f32 0.0, %v292
    %v294 = vpop.f32.mrf.mxu0
    %295 = vdwg.mxu0
    %v296 = vsel %vm109, %v293, -inf
    %297 = vmax.xlane.f32.xlu0 %v296
    %v298 = vpop.xlane.xlu0 %297
    %v299 = vsub.f32 %v293, %v298
    %v300 = vmul.f32 %v299, 1.442695
    %v301 = vpow.pop %v300
    %v302 = vsel %vm109, %v301, 0.0
    %303 = vadd.xlane.f32.xlu0 %v302
    %v304 = vpop.xlane.xlu0 %303
    %v305 = vrcp.pop %v304
    %v306 = vmul.f32 %v304, %v305
    %v307 = vsub.f32 1.0, %v306
    %v308 = vmul.f32 %v305, %v307
    %v309 = vadd.f32 %v305, %v308
    %vm310 = vweird.f32 %v304
    %vm311 = vweird.f32 %v305
    %vm312 = vmor %vm310, %vm311
    %v313 = vsel %vm312, %v305, %v309
    %v314 = vand.u32 2147483647, %v304
    %vm315 = vcmp.eq.f32.partialorder %v314, 8.507059e+37
    %v316 = vand.u32 %v304, 2147483648
    %v317 = vor.u32 1.1754944e-38, %v316
    %v318 = vsel %vm315, %v317, %v313
    %v319 = vmul.f32 %v301, %v318
    %v320 = vpack.c.bf16 %v319, %v319
    %321 = vrot.lane.b32.xlu0 %v135, 96
    %v322 = vpop.permute.xlu0 %321
    %v324 = vsel %vm109, %v320, 0
    %v327 = vsel %vm139, %v322, 0
    %329 = vmatpush.bf16.msra.mxu0 0
    %330 = vmatpush.bf16.msra.mxu0 0
    %331 = vmatpush.bf16.msra.mxu0 0
    %332 = vmatpush.bf16.msra.mxu0 0
    %333 = vmatpush.bf16.msra.mxu0 0
    %334 = vmatpush.bf16.msra.mxu0 0
    %335 = vmatpush.bf16.msra.mxu0 0
    %336 = vmatpush.bf16.msra.mxu0 %v327
    %337 = vmatmul.bf16.gmra.mxu0 %v324
    %v338 = vpop.f32.mrf.mxu0
    %v339 = vadd.f32 0.0, %v338
    %v340 = vpop.f32.mrf.mxu0
    %341 = vdwg.mxu0
    %v342 = vpack.c.bf16 %v339, %v339
    %v345 = vunpack.c.l.b16 %v46
    %v346 = vunpack.c.l.b16 %v47
    %v347 = vpack.c.b16 %v346, %v345
    %v350 = vsel %vm89, %v342, 0
    %352 = vmatpush.bf16.msra.mxu0 0
    %353 = vmatpush.bf16.msra.mxu0 0
    %354 = vmatpush.bf16.msra.mxu0 0
    %355 = vmatpush.bf16.msra.mxu0 0
    %356 = vmatpush.bf16.msra.mxu0 0
    %357 = vmatpush.bf16.msra.mxu0 0
    %358 = vmatpush.bf16.msra.mxu0 0
    %359 = vmatpush.bf16.msra.mxu0 %v347
    %360 = vmatmul.bf16.gmra.mxu0 %v350
    %v361 = vpop.f32.mrf.mxu0
    %v362 = vadd.f32 0.0, %v361
    %v363 = vpop.f32.mrf.mxu0
    %364 = vdwg.mxu0
    %v365 = vadd.f32 %v270, %v362
    %366 = vrot.lane.b32.xlu0 %v84, 80
    %v367 = vpop.permute.xlu0 %366
    %368 = vrot.lane.b32.xlu0 %v85, 16
    %v369 = vpop.permute.xlu0 %368
    %v371 = vsel %vm89, %v367, 0
    %v374 = vsel %vm89, %v369, 0
    %376 = vmatpush.bf16.xpose.msra.mxu0 0
    %377 = vmatpush.bf16.xpose.msra.mxu0 0
    %378 = vmatpush.bf16.xpose.msra.mxu0 0
    %379 = vmatpush.bf16.xpose.msra.mxu0 0
    %380 = vmatpush.bf16.xpose.msra.mxu0 0
    %381 = vmatpush.bf16.xpose.msra.mxu0 0
    %382 = vmatpush.bf16.xpose.msra.mxu0 0
    %383 = vmatpush.bf16.xpose.msra.mxu0 %v374
    %384 = vmatmul.bf16.gmra.mxu0 %v371
    %v385 = vpop.f32.mrf.mxu0
    %v386 = vadd.f32 0.0, %v385
    %v387 = vpop.f32.mrf.mxu0
    %388 = vdwg.mxu0
    %v389 = vsel %vm109, %v386, -inf
    %390 = vmax.xlane.f32.xlu0 %v389
    %v391 = vpop.xlane.xlu0 %390
    %v392 = vsub.f32 %v386, %v391
    %v393 = vmul.f32 %v392, 1.442695
    %v394 = vpow.pop %v393
    %v395 = vsel %vm109, %v394, 0.0
    %396 = vadd.xlane.f32.xlu0 %v395
    %v397 = vpop.xlane.xlu0 %396
    %v398 = vrcp.pop %v397
    %v399 = vmul.f32 %v397, %v398
    %v400 = vsub.f32 1.0, %v399
    %v401 = vmul.f32 %v398, %v400
    %v402 = vadd.f32 %v398, %v401
    %vm403 = vweird.f32 %v397
    %vm404 = vweird.f32 %v398
    %vm405 = vmor %vm403, %vm404
    %v406 = vsel %vm405, %v398, %v402
    %v407 = vand.u32 2147483647, %v397
    %vm408 = vcmp.eq.f32.partialorder %v407, 8.507059e+37
    %v409 = vand.u32 %v397, 2147483648
    %v410 = vor.u32 1.1754944e-38, %v409
    %v411 = vsel %vm408, %v410, %v406
    %v412 = vmul.f32 %v394, %v411
    %v413 = vpack.c.bf16 %v412, %v412
    %414 = vrot.lane.b32.xlu0 %v135, 80
    %v415 = vpop.permute.xlu0 %414
    %v417 = vsel %vm109, %v413, 0
    %v420 = vsel %vm139, %v415, 0
    %422 = vmatpush.bf16.msra.mxu0 0
    %423 = vmatpush.bf16.msra.mxu0 0
    %424 = vmatpush.bf16.msra.mxu0 0
    %425 = vmatpush.bf16.msra.mxu0 0
    %426 = vmatpush.bf16.msra.mxu0 0
    %427 = vmatpush.bf16.msra.mxu0 0
    %428 = vmatpush.bf16.msra.mxu0 0
    %429 = vmatpush.bf16.msra.mxu0 %v420
    %430 = vmatmul.bf16.gmra.mxu0 %v417
    %v431 = vpop.f32.mrf.mxu0
    %v432 = vadd.f32 0.0, %v431
    %v433 = vpop.f32.mrf.mxu0
    %434 = vdwg.mxu0
    %v435 = vpack.c.bf16 %v432, %v432
    %v438 = vunpack.c.l.b16 %v48
    %v439 = vunpack.c.l.b16 %v49
    %v440 = vpack.c.b16 %v439, %v438
    %v443 = vsel %vm89, %v435, 0
    %445 = vmatpush.bf16.msra.mxu0 0
    %446 = vmatpush.bf16.msra.mxu0 0
    %447 = vmatpush.bf16.msra.mxu0 0
    %448 = vmatpush.bf16.msra.mxu0 0
    %449 = vmatpush.bf16.msra.mxu0 0
    %450 = vmatpush.bf16.msra.mxu0 0
    %451 = vmatpush.bf16.msra.mxu0 0
    %452 = vmatpush.bf16.msra.mxu0 %v440
    %453 = vmatmul.bf16.gmra.mxu0 %v443
    %v454 = vpop.f32.mrf.mxu0
    %v455 = vadd.f32 0.0, %v454
    %v456 = vpop.f32.mrf.mxu0
    %457 = vdwg.mxu0
    %v458 = vadd.f32 %v365, %v455
    %v460 = vperm.slane %v50, 0
    %v462 = vadd.f32 %v458, %v460
    %463 = vst.msk [vmem:[#allocation2] sm:$0xff] %vm51, %v462
    %v464 = vmul.f32 %v67, 0.25
    %v465 = vpack.c.bf16 %v464, %v464
    %v466 = vpack.c.bf16 %v67, %v67
    %468 = vrot.lane.b32.xlu0 %v466, 64
    %v469 = vpop.permute.xlu0 %468
    %v471 = vsel %vm89, %v465, 0
    %v474 = vsel %vm89, %v469, 0
    %476 = vmatpush.bf16.xpose.msra.mxu0 0
    %477 = vmatpush.bf16.xpose.msra.mxu0 0
    %478 = vmatpush.bf16.xpose.msra.mxu0 0
    %479 = vmatpush.bf16.xpose.msra.mxu0 0
    %480 = vmatpush.bf16.xpose.msra.mxu0 0
    %481 = vmatpush.bf16.xpose.msra.mxu0 0
    %482 = vmatpush.bf16.xpose.msra.mxu0 0
    %483 = vmatpush.bf16.xpose.msra.mxu0 %v474
    %484 = vmatmul.bf16.gmra.mxu0 %v471
    %v485 = vpop.f32.mrf.mxu0
    %v486 = vadd.f32 0.0, %v485
    %v487 = vpop.f32.mrf.mxu0
    %488 = vdwg.mxu0
    %v489 = vsel %vm109, %v486, -inf
    %490 = vmax.xlane.f32.xlu0 %v489
    %v491 = vpop.xlane.xlu0 %490
    %v492 = vsub.f32 %v486, %v491
    %v493 = vmul.f32 %v492, 1.442695
    %v494 = vpow.pop %v493
    %v495 = vsel %vm109, %v494, 0.0
    %496 = vadd.xlane.f32.xlu0 %v495
    %v497 = vpop.xlane.xlu0 %496
    %v498 = vrcp.pop %v497
    %v499 = vmul.f32 %v497, %v498
    %v500 = vsub.f32 1.0, %v499
    %v501 = vmul.f32 %v498, %v500
    %v502 = vadd.f32 %v498, %v501
    %vm503 = vweird.f32 %v497
    %vm504 = vweird.f32 %v498
    %vm505 = vmor %vm503, %vm504
    %v506 = vsel %vm505, %v498, %v502
    %v507 = vand.u32 2147483647, %v497
    %vm508 = vcmp.eq.f32.partialorder %v507, 8.507059e+37
    %v509 = vand.u32 %v497, 2147483648
    %v510 = vor.u32 1.1754944e-38, %v509
    %v511 = vsel %vm508, %v510, %v506
    %v512 = vmul.f32 %v494, %v511
    %v513 = vpack.c.bf16 %v512, %v512
    %v514 = vpack.c.bf16 %v81, %v81
    %v516 = vsel %vm109, %v513, 0
    %v519 = vsel %vm139, %v514, 0
    %521 = vmatpush.bf16.msra.mxu0 0
    %522 = vmatpush.bf16.msra.mxu0 0
    %523 = vmatpush.bf16.msra.mxu0 0
    %524 = vmatpush.bf16.msra.mxu0 0
    %525 = vmatpush.bf16.msra.mxu0 0
    %526 = vmatpush.bf16.msra.mxu0 0
    %527 = vmatpush.bf16.msra.mxu0 0
    %528 = vmatpush.bf16.msra.mxu0 %v519
    %529 = vmatmul.bf16.gmra.mxu0 %v516
    %v530 = vpop.f32.mrf.mxu0
    %v531 = vadd.f32 0.0, %v530
    %v532 = vpop.f32.mrf.mxu0
    %533 = vdwg.mxu0
    %v534 = vpack.c.bf16 %v531, %v531
    %536 = vrot.lane.b32.xlu0 %v465, 112
    %v537 = vpop.permute.xlu0 %536
    %538 = vrot.lane.b32.xlu0 %v466, 48
    %v539 = vpop.permute.xlu0 %538
    %v541 = vsel %vm89, %v537, 0
    %v544 = vsel %vm89, %v539, 0
    %546 = vmatpush.bf16.xpose.msra.mxu0 0
    %547 = vmatpush.bf16.xpose.msra.mxu0 0
    %548 = vmatpush.bf16.xpose.msra.mxu0 0
    %549 = vmatpush.bf16.xpose.msra.mxu0 0
    %550 = vmatpush.bf16.xpose.msra.mxu0 0
    %551 = vmatpush.bf16.xpose.msra.mxu0 0
    %552 = vmatpush.bf16.xpose.msra.mxu0 0
    %553 = vmatpush.bf16.xpose.msra.mxu0 %v544
    %554 = vmatmul.bf16.gmra.mxu0 %v541
    %v555 = vpop.f32.mrf.mxu0
    %v556 = vadd.f32 0.0, %v555
    %v557 = vpop.f32.mrf.mxu0
    %558 = vdwg.mxu0
    %v559 = vsel %vm109, %v556, -inf
    %560 = vmax.xlane.f32.xlu0 %v559
    %v561 = vpop.xlane.xlu0 %560
    %v562 = vsub.f32 %v556, %v561
    %v563 = vmul.f32 %v562, 1.442695
    %v564 = vpow.pop %v563
    %v565 = vsel %vm109, %v564, 0.0
    %566 = vadd.xlane.f32.xlu0 %v565
    %v567 = vpop.xlane.xlu0 %566
    %v568 = vrcp.pop %v567
    %v569 = vmul.f32 %v567, %v568
    %v570 = vsub.f32 1.0, %v569
    %v571 = vmul.f32 %v568, %v570
    %v572 = vadd.f32 %v568, %v571
    %vm573 = vweird.f32 %v567
    %vm574 = vweird.f32 %v568
    %vm575 = vmor %vm573, %vm574
    %v576 = vsel %vm575, %v568, %v572
    %v577 = vand.u32 2147483647, %v567
    %vm578 = vcmp.eq.f32.partialorder %v577, 8.507059e+37
    %v579 = vand.u32 %v567, 2147483648
    %v580 = vor.u32 1.1754944e-38, %v579
    %v581 = vsel %vm578, %v580, %v576
    %v582 = vmul.f32 %v564, %v581
    %v583 = vpack.c.bf16 %v582, %v582
    %585 = vrot.lane.b32.xlu0 %v514, 112
    %v586 = vpop.permute.xlu0 %585
    %v588 = vsel %vm109, %v583, 0
    %v591 = vsel %vm139, %v586, 0
    %593 = vmatpush.bf16.msra.mxu0 0
    %594 = vmatpush.bf16.msra.mxu0 0
    %595 = vmatpush.bf16.msra.mxu0 0
    %596 = vmatpush.bf16.msra.mxu0 0
    %597 = vmatpush.bf16.msra.mxu0 0
    %598 = vmatpush.bf16.msra.mxu0 0
    %599 = vmatpush.bf16.msra.mxu0 0
    %600 = vmatpush.bf16.msra.mxu0 %v591
    %601 = vmatmul.bf16.gmra.mxu0 %v588
    %v602 = vpop.f32.mrf.mxu0
    %v603 = vadd.f32 0.0, %v602
    %v604 = vpop.f32.mrf.mxu0
    %605 = vdwg.mxu0
    %v606 = vpack.c.bf16 %v603, %v603
    %v608 = vsel %vm89, %v606, 0
    %610 = vmatpush.bf16.msra.mxu0 0
    %611 = vmatpush.bf16.msra.mxu0 0
    %612 = vmatpush.bf16.msra.mxu0 0
    %613 = vmatpush.bf16.msra.mxu0 0
    %614 = vmatpush.bf16.msra.mxu0 0
    %615 = vmatpush.bf16.msra.mxu0 0
    %616 = vmatpush.bf16.msra.mxu0 0
    %617 = vmatpush.bf16.msra.mxu0 %v233
    %618 = vmatmul.bf16.gmra.mxu0 %v608
    %v619 = vpop.f32.mrf.mxu0
    %v620 = vadd.f32 0.0, %v619
    %v621 = vpop.f32.mrf.mxu0
    %622 = vdwg.mxu0
    %v624 = vsel %vm89, %v534, 0
    %626 = vmatpush.bf16.msra.mxu0 0
    %627 = vmatpush.bf16.msra.mxu0 0
    %628 = vmatpush.bf16.msra.mxu0 0
    %629 = vmatpush.bf16.msra.mxu0 0
    %630 = vmatpush.bf16.msra.mxu0 0
    %631 = vmatpush.bf16.msra.mxu0 0
    %632 = vmatpush.bf16.msra.mxu0 0
    %633 = vmatpush.bf16.msra.mxu0 %v255
    %634 = vmatmul.bf16.gmra.mxu0 %v624
    %v635 = vpop.f32.mrf.mxu0
    %v636 = vadd.f32 %v620, %v635
    %v637 = vpop.f32.mrf.mxu0
    %638 = vdwg.mxu0
    %639 = vrot.lane.b32.xlu0 %v465, 96
    %v640 = vpop.permute.xlu0 %639
    %641 = vrot.lane.b32.xlu0 %v466, 32
    %v642 = vpop.permute.xlu0 %641
    %v644 = vsel %vm89, %v640, 0
    %v647 = vsel %vm89, %v642, 0
    %649 = vmatpush.bf16.xpose.msra.mxu0 0
    %650 = vmatpush.bf16.xpose.msra.mxu0 0
    %651 = vmatpush.bf16.xpose.msra.mxu0 0
    %652 = vmatpush.bf16.xpose.msra.mxu0 0
    %653 = vmatpush.bf16.xpose.msra.mxu0 0
    %654 = vmatpush.bf16.xpose.msra.mxu0 0
    %655 = vmatpush.bf16.xpose.msra.mxu0 0
    %656 = vmatpush.bf16.xpose.msra.mxu0 %v647
    %657 = vmatmul.bf16.gmra.mxu0 %v644
    %v658 = vpop.f32.mrf.mxu0
    %v659 = vadd.f32 0.0, %v658
    %v660 = vpop.f32.mrf.mxu0
    %661 = vdwg.mxu0
    %v662 = vsel %vm109, %v659, -inf
    %663 = vmax.xlane.f32.xlu0 %v662
    %v664 = vpop.xlane.xlu0 %663
    %v665 = vsub.f32 %v659, %v664
    %v666 = vmul.f32 %v665, 1.442695
    %v667 = vpow.pop %v666
    %v668 = vsel %vm109, %v667, 0.0
    %669 = vadd.xlane.f32.xlu0 %v668
    %v670 = vpop.xlane.xlu0 %669
    %v671 = vrcp.pop %v670
    %v672 = vmul.f32 %v670, %v671
    %v673 = vsub.f32 1.0, %v672
    %v674 = vmul.f32 %v671, %v673
    %v675 = vadd.f32 %v671, %v674
    %vm676 = vweird.f32 %v670
    %vm677 = vweird.f32 %v671
    %vm678 = vmor %vm676, %vm677
    %v679 = vsel %vm678, %v671, %v675
    %v680 = vand.u32 2147483647, %v670
    %vm681 = vcmp.eq.f32.partialorder %v680, 8.507059e+37
    %v682 = vand.u32 %v670, 2147483648
    %v683 = vor.u32 1.1754944e-38, %v682
    %v684 = vsel %vm681, %v683, %v679
    %v685 = vmul.f32 %v667, %v684
    %v686 = vpack.c.bf16 %v685, %v685
    %687 = vrot.lane.b32.xlu0 %v514, 96
    %v688 = vpop.permute.xlu0 %687
    %v690 = vsel %vm109, %v686, 0
    %v693 = vsel %vm139, %v688, 0
    %695 = vmatpush.bf16.msra.mxu0 0
    %696 = vmatpush.bf16.msra.mxu0 0
    %697 = vmatpush.bf16.msra.mxu0 0
    %698 = vmatpush.bf16.msra.mxu0 0
    %699 = vmatpush.bf16.msra.mxu0 0
    %700 = vmatpush.bf16.msra.mxu0 0
    %701 = vmatpush.bf16.msra.mxu0 0
    %702 = vmatpush.bf16.msra.mxu0 %v693
    %703 = vmatmul.bf16.gmra.mxu0 %v690
    %v704 = vpop.f32.mrf.mxu0
    %v705 = vadd.f32 0.0, %v704
    %v706 = vpop.f32.mrf.mxu0
    %707 = vdwg.mxu0
    %v708 = vpack.c.bf16 %v705, %v705
    %v710 = vsel %vm89, %v708, 0
    %712 = vmatpush.bf16.msra.mxu0 0
    %713 = vmatpush.bf16.msra.mxu0 0
    %714 = vmatpush.bf16.msra.mxu0 0
    %715 = vmatpush.bf16.msra.mxu0 0
    %716 = vmatpush.bf16.msra.mxu0 0
    %717 = vmatpush.bf16.msra.mxu0 0
    %718 = vmatpush.bf16.msra.mxu0 0
    %719 = vmatpush.bf16.msra.mxu0 %v347
    %720 = vmatmul.bf16.gmra.mxu0 %v710
    %v721 = vpop.f32.mrf.mxu0
    %v722 = vadd.f32 0.0, %v721
    %v723 = vpop.f32.mrf.mxu0
    %724 = vdwg.mxu0
    %v725 = vadd.f32 %v636, %v722
    %726 = vrot.lane.b32.xlu0 %v465, 80
    %v727 = vpop.permute.xlu0 %726
    %728 = vrot.lane.b32.xlu0 %v466, 16
    %v729 = vpop.permute.xlu0 %728
    %v731 = vsel %vm89, %v727, 0
    %v734 = vsel %vm89, %v729, 0
    %736 = vmatpush.bf16.xpose.msra.mxu0 0
    %737 = vmatpush.bf16.xpose.msra.mxu0 0
    %738 = vmatpush.bf16.xpose.msra.mxu0 0
    %739 = vmatpush.bf16.xpose.msra.mxu0 0
    %740 = vmatpush.bf16.xpose.msra.mxu0 0
    %741 = vmatpush.bf16.xpose.msra.mxu0 0
    %742 = vmatpush.bf16.xpose.msra.mxu0 0
    %743 = vmatpush.bf16.xpose.msra.mxu0 %v734
    %744 = vmatmul.bf16.gmra.mxu0 %v731
    %v745 = vpop.f32.mrf.mxu0
    %v746 = vadd.f32 0.0, %v745
    %v747 = vpop.f32.mrf.mxu0
    %748 = vdwg.mxu0
    %v749 = vsel %vm109, %v746, -inf
    %750 = vmax.xlane.f32.xlu0 %v749
    %v751 = vpop.xlane.xlu0 %750
    %v752 = vsub.f32 %v746, %v751
    %v753 = vmul.f32 %v752, 1.442695
    %v754 = vpow.pop %v753
    %v755 = vsel %vm109, %v754, 0.0
    %756 = vadd.xlane.f32.xlu0 %v755
    %v757 = vpop.xlane.xlu0 %756
    %v758 = vrcp.pop %v757
    %v759 = vmul.f32 %v757, %v758
    %v760 = vsub.f32 1.0, %v759
    %v761 = vmul.f32 %v758, %v760
    %v762 = vadd.f32 %v758, %v761
    %vm763 = vweird.f32 %v757
    %vm764 = vweird.f32 %v758
    %vm765 = vmor %vm763, %vm764
    %v766 = vsel %vm765, %v758, %v762
    %v767 = vand.u32 2147483647, %v757
    %vm768 = vcmp.eq.f32.partialorder %v767, 8.507059e+37
    %v769 = vand.u32 %v757, 2147483648
    %v770 = vor.u32 1.1754944e-38, %v769
    %v771 = vsel %vm768, %v770, %v766
    %v772 = vmul.f32 %v754, %v771
    %v773 = vpack.c.bf16 %v772, %v772
    %774 = vrot.lane.b32.xlu0 %v514, 80
    %v775 = vpop.permute.xlu0 %774
    %v777 = vsel %vm109, %v773, 0
    %v780 = vsel %vm139, %v775, 0
    %782 = vmatpush.bf16.msra.mxu0 0
    %783 = vmatpush.bf16.msra.mxu0 0
    %784 = vmatpush.bf16.msra.mxu0 0
    %785 = vmatpush.bf16.msra.mxu0 0
    %786 = vmatpush.bf16.msra.mxu0 0
    %787 = vmatpush.bf16.msra.mxu0 0
    %788 = vmatpush.bf16.msra.mxu0 0
    %789 = vmatpush.bf16.msra.mxu0 %v780
    %790 = vmatmul.bf16.gmra.mxu0 %v777
    %v791 = vpop.f32.mrf.mxu0
    %v792 = vadd.f32 0.0, %v791
    %v793 = vpop.f32.mrf.mxu0
    %794 = vdwg.mxu0
    %v795 = vpack.c.bf16 %v792, %v792
    %v797 = vsel %vm89, %v795, 0
    %799 = vmatpush.bf16.msra.mxu0 0
    %800 = vmatpush.bf16.msra.mxu0 0
    %801 = vmatpush.bf16.msra.mxu0 0
    %802 = vmatpush.bf16.msra.mxu0 0
    %803 = vmatpush.bf16.msra.mxu0 0
    %804 = vmatpush.bf16.msra.mxu0 0
    %805 = vmatpush.bf16.msra.mxu0 0
    %806 = vmatpush.bf16.msra.mxu0 %v440
    %807 = vmatmul.bf16.gmra.mxu0 %v797
    %v808 = vpop.f32.mrf.mxu0
    %v809 = vadd.f32 0.0, %v808
    %v810 = vpop.f32.mrf.mxu0
    %811 = vdwg.mxu0
    %v812 = vadd.f32 %v725, %v809
    %v813 = vadd.f32 %v812, %v460
    %814 = vst.msk [vmem:[#allocation2 + $0x8] sm:$0xff] %vm51, %v813
    // Predicated region
    $region18: #{tpu_custom_call.1} parent=1 // pred_check
      _
    $region19: #{tpu_custom_call.1} parent=1 // pred_check_branch
      %816 = sbr.rel (0) target = $region21
    $region20: #{tpu_custom_call.1} parent=1 // pred_region
      %818 = vsyncadd [#allocation3], 0
      %s819 = sshll.u32 [#allocation2], 4
      %s820 = int_to_ptr.vmem [resolvable:$true] %s819
      %s821 = sshll.u32 %s4, 4
      %s822 = int_to_ptr.hbm [resolvable:$true] %s821
      %827 = dma.vmem_to_hbm [thread:$0]  %s820, 256, %s822, [#allocation3], 128, 128, 8
    $region21: #{tpu_custom_call.1} parent=1 // pred_fallthru
      _
    // Predicated region
    $region22: #{tpu_custom_call.1} parent=1 // pred_check
      _
    $region23: #{tpu_custom_call.1} parent=1 // pred_check_branch
      %829 = sbr.rel (0) target = $region25
    $region24: #{tpu_custom_call.1} parent=1 // pred_region
      %831 = dma.done [#allocation3], 256
    $region25: #{tpu_custom_call.1} parent=1 // pred_fallthru
      _
    %832 = vsyncpa [#allocation3], 1

// kernel: tpu_custom_call.1
$region0: #{tpu_custom_call.1}
  #allocation0 [shape = 'u32[]', space=smem, size = 0x4, offset = 0x4, fixed_abs, tag = 'smem constant byte address 0x4 - core index']
  #allocation1 [shape = 'u32[72,128]{1,0:T(1,128)}', space=vmem, size = 0x9000, scoped, tag = 'internal scratch']
  %s0 = inlined_call_operand.vmem [shape: f32[16,32], index: 0, kind: input, shape index: {}]
  %s1 = inlined_call_operand.vmem [shape: f32[32,192], index: 1, kind: input, shape index: {}]
  %s2 = inlined_call_operand.vmem [shape: f32[64,32], index: 2, kind: input, shape index: {}]
  %s3 = inlined_call_operand.vmem [shape: f32[1,32], index: 3, kind: input, shape index: {}]
  %s4 = inlined_call_operand.hbm [shape: f32[16,32], index: 4, kind: output, shape index: {}]
  %s5 = sld [smem:[#allocation0]]
  $region26: #{tpu_custom_call.1} parent=0
    _
  %s7 = ssub.s32 1, %s5
  %s8 = scalar_select 0, %s7, %s5
  $region1: #{tpu_custom_call.1} parent=0
    #allocation2 [shape = 'u8[8192]{0}', space=vmem, size = 0x2000, scoped, tag = 'output window, operand 0, single buffered']
    #allocation3 [shape = 's32[1]{0}', space=sflag, size = 0x4, scoped, tag = 'scoped memory for tpu_custom_call.1']
    %9 = vsyncpa [#allocation3], 0
    // Predicated region
    $region2: #{tpu_custom_call.1} parent=1 // pred_check
      _
    $region3: #{tpu_custom_call.1} parent=1 // pred_check_branch
      %11 = sbr.rel (0) target = $region5
    $region4: #{tpu_custom_call.1} parent=1 // pred_region
      _
    $region5: #{tpu_custom_call.1} parent=1 // pred_fallthru
      _
    // Predicated region
    $region6: #{tpu_custom_call.1} parent=1 // pred_check
      _
    $region7: #{tpu_custom_call.1} parent=1 // pred_check_branch
      %13 = sbr.rel (0) target = $region9
    $region8: #{tpu_custom_call.1} parent=1 // pred_region
      _
    $region9: #{tpu_custom_call.1} parent=1 // pred_fallthru
      _
    // Predicated region
    $region10: #{tpu_custom_call.1} parent=1 // pred_check
      _
    $region11: #{tpu_custom_call.1} parent=1 // pred_check_branch
      %15 = sbr.rel (0) target = $region13
    $region12: #{tpu_custom_call.1} parent=1 // pred_region
      _
    $region13: #{tpu_custom_call.1} parent=1 // pred_fallthru
      _
    // Predicated region
    $region14: #{tpu_custom_call.1} parent=1 // pred_check
      _
    $region15: #{tpu_custom_call.1} parent=1 // pred_check_branch
      %17 = sbr.rel (0) target = $region17
    $region16: #{tpu_custom_call.1} parent=1 // pred_region
      _
    $region17: #{tpu_custom_call.1} parent=1 // pred_fallthru
      _
    %v19 = vld [vmem:[%s0] sm:$0xff]
    %v20 = vld [vmem:[%s0 + $0x8] sm:$0xff]
    %v21 = vpack.c.bf16 %v20, %v19
    %v22 = vld [vmem:[%s1] sm:$0xff]
    %v23 = vld [vmem:[%s1 + $0x8] sm:$0xff]
    %v24 = vld [vmem:[%s1 + $0x10] sm:$0xff]
    %v25 = vld [vmem:[%s1 + $0x18] sm:$0xff]
    %v26 = vld [vmem:[%s1 + $0x20] sm:$0xff]
    %v27 = vld [vmem:[%s1 + $0x28] sm:$0xff]
    %v28 = vld [vmem:[%s1 + $0x30] sm:$0xff]
    %v29 = vld [vmem:[%s1 + $0x38] sm:$0xff]
    %v30 = vpack.c.bf16 %v24, %v22
    %v31 = vpack.c.bf16 %v25, %v23
    %v32 = vpack.c.bf16 %v28, %v26
    %v33 = vpack.c.bf16 %v29, %v27
    %v34 = vld [vmem:[%s2] sm:$0xff]
    %v35 = vld [vmem:[%s2 + $0x8] sm:$0xff]
    %v36 = vld [vmem:[%s2 + $0x10] sm:$0xff]
    %v37 = vld [vmem:[%s2 + $0x18] sm:$0xff]
    %v38 = vld [vmem:[%s2 + $0x20] sm:$0xff]
    %v39 = vld [vmem:[%s2 + $0x28] sm:$0xff]
    %v40 = vld [vmem:[%s2 + $0x30] sm:$0xff]
    %v41 = vld [vmem:[%s2 + $0x38] sm:$0xff]
    %v42 = vpack.c.bf16 %v34, %v34
    %v43 = vpack.c.bf16 %v35, %v35
    %v44 = vpack.c.bf16 %v36, %v36
    %v45 = vpack.c.bf16 %v37, %v37
    %v46 = vpack.c.bf16 %v38, %v38
    %v47 = vpack.c.bf16 %v39, %v39
    %v48 = vpack.c.bf16 %v40, %v40
    %v49 = vpack.c.bf16 %v41, %v41
    %v50 = vld [vmem:[%s3] sm:$0x1]
    %vm51 = vcmask 261120
    %v53 = vsel %vm51, %v21, 0
    %55 = vmatpush.bf16.msra.mxu0 0
    %56 = vmatpush.bf16.msra.mxu0 0
    %57 = vmatpush.bf16.msra.mxu0 0
    %58 = vmatpush.bf16.msra.mxu0 0
    %59 = vmatpush.bf16.msra.mxu0 0
    %60 = vmatpush.bf16.msra.mxu0 0
    %61 = vmatpush.bf16.msra.mxu0 %v32
    %62 = vmatpush.bf16.msra.mxu0 %v30
    %63 = vmatmul.bf16.gmra.mxu0 %v53
    %v64 = vpop.f32.mrf.mxu0
    %v65 = vadd.f32 0.0, %v64
    %v66 = vpop.f32.mrf.mxu0
    %v67 = vadd.f32 0.0, %v66
    %68 = vdwg.mxu0
    %69 = vmatpush.bf16.msra.mxu0 0
    %70 = vmatpush.bf16.msra.mxu0 0
    %71 = vmatpush.bf16.msra.mxu0 0
    %72 = vmatpush.bf16.msra.mxu0 0
    %73 = vmatpush.bf16.msra.mxu0 0
    %74 = vmatpush.bf16.msra.mxu0 0
    %75 = vmatpush.bf16.msra.mxu0 %v33
    %76 = vmatpush.bf16.msra.mxu0 %v31
    %77 = vmatmul.bf16.gmra.mxu0 %v53
    %v78 = vpop.f32.mrf.mxu0
    %v79 = vadd.f32 0.0, %v78
    %v80 = vpop.f32.mrf.mxu0
    %v81 = vadd.f32 0.0, %v80
    %82 = vdwg.mxu0
    %v83 = vmul.f32 %v65, 0.25
    %v84 = vpack.c.bf16 %v83, %v83
    %v85 = vpack.c.bf16 %v65, %v65
    %87 = vrot.lane.b32.xlu0 %v85, 64
    %v88 = vpop.permute.xlu0 %87
    %vm89 = vcmask 130048
    %v91 = vsel %vm89, %v84, 0
    %v94 = vsel %vm89, %v88, 0
    %96 = vmatpush.bf16.xpose.msra.mxu0 0
    %97 = vmatpush.bf16.xpose.msra.mxu0 0
    %98 = vmatpush.bf16.xpose.msra.mxu0 0
    %99 = vmatpush.bf16.xpose.msra.mxu0 0
    %100 = vmatpush.bf16.xpose.msra.mxu0 0
    %101 = vmatpush.bf16.xpose.msra.mxu0 0
    %102 = vmatpush.bf16.xpose.msra.mxu0 0
    %103 = vmatpush.bf16.xpose.msra.mxu0 %v94
    %104 = vmatmul.bf16.gmra.mxu0 %v91
    %v105 = vpop.f32.mrf.mxu0
    %v106 = vadd.f32 0.0, %v105
    %v107 = vpop.f32.mrf.mxu0
    %108 = vdwg.mxu0
    %vm109 = vcmask 64512
    %v110 = vsel %vm109, %v106, -inf
    %111 = vmax.xlane.f32.xlu0 %v110
    %v112 = vpop.xlane.xlu0 %111
    %v113 = vsub.f32 %v106, %v112
    %v114 = vmul.f32 %v113, 1.442695
    %v115 = vpow.pop %v114
    %v116 = vsel %vm109, %v115, 0.0
    %117 = vadd.xlane.f32.xlu0 %v116
    %v118 = vpop.xlane.xlu0 %117
    %v119 = vrcp.pop %v118
    %v120 = vmul.f32 %v118, %v119
    %v121 = vsub.f32 1.0, %v120
    %v122 = vmul.f32 %v119, %v121
    %v123 = vadd.f32 %v119, %v122
    %vm124 = vweird.f32 %v118
    %vm125 = vweird.f32 %v119
    %vm126 = vmor %vm124, %vm125
    %v127 = vsel %vm126, %v119, %v123
    %v128 = vand.u32 2147483647, %v118
    %vm129 = vcmp.eq.f32.partialorder %v128, 8.507059e+37
    %v130 = vand.u32 %v118, 2147483648
    %v131 = vor.u32 1.1754944e-38, %v130
    %v132 = vsel %vm129, %v131, %v127
    %v133 = vmul.f32 %v115, %v132
    %v134 = vpack.c.bf16 %v133, %v133
    %v135 = vpack.c.bf16 %v79, %v79
    %v137 = vsel %vm109, %v134, 0
    %vm139 = vcmask 1043456
    %v141 = vsel %vm139, %v135, 0
    %143 = vmatpush.bf16.msra.mxu0 0
    %144 = vmatpush.bf16.msra.mxu0 0
    %145 = vmatpush.bf16.msra.mxu0 0
    %146 = vmatpush.bf16.msra.mxu0 0
    %147 = vmatpush.bf16.msra.mxu0 0
    %148 = vmatpush.bf16.msra.mxu0 0
    %149 = vmatpush.bf16.msra.mxu0 0
    %150 = vmatpush.bf16.msra.mxu0 %v141
    %151 = vmatmul.bf16.gmra.mxu0 %v137
    %v152 = vpop.f32.mrf.mxu0
    %v153 = vadd.f32 0.0, %v152
    %v154 = vpop.f32.mrf.mxu0
    %155 = vdwg.mxu0
    %v156 = vpack.c.bf16 %v153, %v153
    %158 = vrot.lane.b32.xlu0 %v84, 112
    %v159 = vpop.permute.xlu0 %158
    %160 = vrot.lane.b32.xlu0 %v85, 48
    %v161 = vpop.permute.xlu0 %160
    %v163 = vsel %vm89, %v159, 0
    %v166 = vsel %vm89, %v161, 0
    %168 = vmatpush.bf16.xpose.msra.mxu0 0
    %169 = vmatpush.bf16.xpose.msra.mxu0 0
    %170 = vmatpush.bf16.xpose.msra.mxu0 0
    %171 = vmatpush.bf16.xpose.msra.mxu0 0
    %172 = vmatpush.bf16.xpose.msra.mxu0 0
    %173 = vmatpush.bf16.xpose.msra.mxu0 0
    %174 = vmatpush.bf16.xpose.msra.mxu0 0
    %175 = vmatpush.bf16.xpose.msra.mxu0 %v166
    %176 = vmatmul.bf16.gmra.mxu0 %v163
    %v177 = vpop.f32.mrf.mxu0
    %v178 = vadd.f32 0.0, %v177
    %v179 = vpop.f32.mrf.mxu0
    %180 = vdwg.mxu0
    %v181 = vsel %vm109, %v178, -inf
    %182 = vmax.xlane.f32.xlu0 %v181
    %v183 = vpop.xlane.xlu0 %182
    %v184 = vsub.f32 %v178, %v183
    %v185 = vmul.f32 %v184, 1.442695
    %v186 = vpow.pop %v185
    %v187 = vsel %vm109, %v186, 0.0
    %188 = vadd.xlane.f32.xlu0 %v187
    %v189 = vpop.xlane.xlu0 %188
    %v190 = vrcp.pop %v189
    %v191 = vmul.f32 %v189, %v190
    %v192 = vsub.f32 1.0, %v191
    %v193 = vmul.f32 %v190, %v192
    %v194 = vadd.f32 %v190, %v193
    %vm195 = vweird.f32 %v189
    %vm196 = vweird.f32 %v190
    %vm197 = vmor %vm195, %vm196
    %v198 = vsel %vm197, %v190, %v194
    %v199 = vand.u32 2147483647, %v189
    %vm200 = vcmp.eq.f32.partialorder %v199, 8.507059e+37
    %v201 = vand.u32 %v189, 2147483648
    %v202 = vor.u32 1.1754944e-38, %v201
    %v203 = vsel %vm200, %v202, %v198
    %v204 = vmul.f32 %v186, %v203
    %v205 = vpack.c.bf16 %v204, %v204
    %207 = vrot.lane.b32.xlu0 %v135, 112
    %v208 = vpop.permute.xlu0 %207
    %v210 = vsel %vm109, %v205, 0
    %v213 = vsel %vm139, %v208, 0
    %215 = vmatpush.bf16.msra.mxu0 0
    %216 = vmatpush.bf16.msra.mxu0 0
    %217 = vmatpush.bf16.msra.mxu0 0
    %218 = vmatpush.bf16.msra.mxu0 0
    %219 = vmatpush.bf16.msra.mxu0 0
    %220 = vmatpush.bf16.msra.mxu0 0
    %221 = vmatpush.bf16.msra.mxu0 0
    %222 = vmatpush.bf16.msra.mxu0 %v213
    %223 = vmatmul.bf16.gmra.mxu0 %v210
    %v224 = vpop.f32.mrf.mxu0
    %v225 = vadd.f32 0.0, %v224
    %v226 = vpop.f32.mrf.mxu0
    %227 = vdwg.mxu0
    %v228 = vpack.c.bf16 %v225, %v225
    %v231 = vunpack.c.l.b16 %v44
    %v232 = vunpack.c.l.b16 %v45
    %v233 = vpack.c.b16 %v232, %v231
    %v236 = vsel %vm89, %v228, 0
    %238 = vmatpush.bf16.msra.mxu0 0
    %239 = vmatpush.bf16.msra.mxu0 0
    %240 = vmatpush.bf16.msra.mxu0 0
    %241 = vmatpush.bf16.msra.mxu0 0
    %242 = vmatpush.bf16.msra.mxu0 0
    %243 = vmatpush.bf16.msra.mxu0 0
    %244 = vmatpush.bf16.msra.mxu0 0
    %245 = vmatpush.bf16.msra.mxu0 %v233
    %246 = vmatmul.bf16.gmra.mxu0 %v236
    %v247 = vpop.f32.mrf.mxu0
    %v248 = vadd.f32 0.0, %v247
    %v249 = vpop.f32.mrf.mxu0
    %250 = vdwg.mxu0
    %v253 = vunpack.c.l.b16 %v42
    %v254 = vunpack.c.l.b16 %v43
    %v255 = vpack.c.b16 %v254, %v253
    %v258 = vsel %vm89, %v156, 0
    %260 = vmatpush.bf16.msra.mxu0 0
    %261 = vmatpush.bf16.msra.mxu0 0
    %262 = vmatpush.bf16.msra.mxu0 0
    %263 = vmatpush.bf16.msra.mxu0 0
    %264 = vmatpush.bf16.msra.mxu0 0
    %265 = vmatpush.bf16.msra.mxu0 0
    %266 = vmatpush.bf16.msra.mxu0 0
    %267 = vmatpush.bf16.msra.mxu0 %v255
    %268 = vmatmul.bf16.gmra.mxu0 %v258
    %v269 = vpop.f32.mrf.mxu0
    %v270 = vadd.f32 %v248, %v269
    %v271 = vpop.f32.mrf.mxu0
    %272 = vdwg.mxu0
    %273 = vrot.lane.b32.xlu0 %v84, 96
    %v274 = vpop.permute.xlu0 %273
    %275 = vrot.lane.b32.xlu0 %v85, 32
    %v276 = vpop.permute.xlu0 %275
    %v278 = vsel %vm89, %v274, 0
    %v281 = vsel %vm89, %v276, 0
    %283 = vmatpush.bf16.xpose.msra.mxu0 0
    %284 = vmatpush.bf16.xpose.msra.mxu0 0
    %285 = vmatpush.bf16.xpose.msra.mxu0 0
    %286 = vmatpush.bf16.xpose.msra.mxu0 0
    %287 = vmatpush.bf16.xpose.msra.mxu0 0
    %288 = vmatpush.bf16.xpose.msra.mxu0 0
    %289 = vmatpush.bf16.xpose.msra.mxu0 0
    %290 = vmatpush.bf16.xpose.msra.mxu0 %v281
    %291 = vmatmul.bf16.gmra.mxu0 %v278
    %v292 = vpop.f32.mrf.mxu0
    %v293 = vadd.f32 0.0, %v292
    %v294 = vpop.f32.mrf.mxu0
    %295 = vdwg.mxu0
    %v296 = vsel %vm109, %v293, -inf
    %297 = vmax.xlane.f32.xlu0 %v296
    %v298 = vpop.xlane.xlu0 %297
    %v299 = vsub.f32 %v293, %v298
    %v300 = vmul.f32 %v299, 1.442695
    %v301 = vpow.pop %v300
    %v302 = vsel %vm109, %v301, 0.0
    %303 = vadd.xlane.f32.xlu0 %v302
    %v304 = vpop.xlane.xlu0 %303
    %v305 = vrcp.pop %v304
    %v306 = vmul.f32 %v304, %v305
    %v307 = vsub.f32 1.0, %v306
    %v308 = vmul.f32 %v305, %v307
    %v309 = vadd.f32 %v305, %v308
    %vm310 = vweird.f32 %v304
    %vm311 = vweird.f32 %v305
    %vm312 = vmor %vm310, %vm311
    %v313 = vsel %vm312, %v305, %v309
    %v314 = vand.u32 2147483647, %v304
    %vm315 = vcmp.eq.f32.partialorder %v314, 8.507059e+37
    %v316 = vand.u32 %v304, 2147483648
    %v317 = vor.u32 1.1754944e-38, %v316
    %v318 = vsel %vm315, %v317, %v313
    %v319 = vmul.f32 %v301, %v318
    %v320 = vpack.c.bf16 %v319, %v319
    %321 = vrot.lane.b32.xlu0 %v135, 96
    %v322 = vpop.permute.xlu0 %321
    %v324 = vsel %vm109, %v320, 0
    %v327 = vsel %vm139, %v322, 0
    %329 = vmatpush.bf16.msra.mxu0 0
    %330 = vmatpush.bf16.msra.mxu0 0
    %331 = vmatpush.bf16.msra.mxu0 0
    %332 = vmatpush.bf16.msra.mxu0 0
    %333 = vmatpush.bf16.msra.mxu0 0
    %334 = vmatpush.bf16.msra.mxu0 0
    %335 = vmatpush.bf16.msra.mxu0 0
    %336 = vmatpush.bf16.msra.mxu0 %v327
    %337 = vmatmul.bf16.gmra.mxu0 %v324
    %v338 = vpop.f32.mrf.mxu0
    %v339 = vadd.f32 0.0, %v338
    %v340 = vpop.f32.mrf.mxu0
    %341 = vdwg.mxu0
    %v342 = vpack.c.bf16 %v339, %v339
    %v345 = vunpack.c.l.b16 %v46
    %v346 = vunpack.c.l.b16 %v47
    %v347 = vpack.c.b16 %v346, %v345
    %v350 = vsel %vm89, %v342, 0
    %352 = vmatpush.bf16.msra.mxu0 0
    %353 = vmatpush.bf16.msra.mxu0 0
    %354 = vmatpush.bf16.msra.mxu0 0
    %355 = vmatpush.bf16.msra.mxu0 0
    %356 = vmatpush.bf16.msra.mxu0 0
    %357 = vmatpush.bf16.msra.mxu0 0
    %358 = vmatpush.bf16.msra.mxu0 0
    %359 = vmatpush.bf16.msra.mxu0 %v347
    %360 = vmatmul.bf16.gmra.mxu0 %v350
    %v361 = vpop.f32.mrf.mxu0
    %v362 = vadd.f32 0.0, %v361
    %v363 = vpop.f32.mrf.mxu0
    %364 = vdwg.mxu0
    %v365 = vadd.f32 %v270, %v362
    %366 = vrot.lane.b32.xlu0 %v84, 80
    %v367 = vpop.permute.xlu0 %366
    %368 = vrot.lane.b32.xlu0 %v85, 16
    %v369 = vpop.permute.xlu0 %368
    %v371 = vsel %vm89, %v367, 0
    %v374 = vsel %vm89, %v369, 0
    %376 = vmatpush.bf16.xpose.msra.mxu0 0
    %377 = vmatpush.bf16.xpose.msra.mxu0 0
    %378 = vmatpush.bf16.xpose.msra.mxu0 0
    %379 = vmatpush.bf16.xpose.msra.mxu0 0
    %380 = vmatpush.bf16.xpose.msra.mxu0 0
    %381 = vmatpush.bf16.xpose.msra.mxu0 0
    %382 = vmatpush.bf16.xpose.msra.mxu0 0
    %383 = vmatpush.bf16.xpose.msra.mxu0 %v374
    %384 = vmatmul.bf16.gmra.mxu0 %v371
    %v385 = vpop.f32.mrf.mxu0
    %v386 = vadd.f32 0.0, %v385
    %v387 = vpop.f32.mrf.mxu0
    %388 = vdwg.mxu0
    %v389 = vsel %vm109, %v386, -inf
    %390 = vmax.xlane.f32.xlu0 %v389
    %v391 = vpop.xlane.xlu0 %390
    %v392 = vsub.f32 %v386, %v391
    %v393 = vmul.f32 %v392, 1.442695
    %v394 = vpow.pop %v393
    %v395 = vsel %vm109, %v394, 0.0
    %396 = vadd.xlane.f32.xlu0 %v395
    %v397 = vpop.xlane.xlu0 %396
    %v398 = vrcp.pop %v397
    %v399 = vmul.f32 %v397, %v398
    %v400 = vsub.f32 1.0, %v399
    %v401 = vmul.f32 %v398, %v400
    %v402 = vadd.f32 %v398, %v401
    %vm403 = vweird.f32 %v397
    %vm404 = vweird.f32 %v398
    %vm405 = vmor %vm403, %vm404
    %v406 = vsel %vm405, %v398, %v402
    %v407 = vand.u32 2147483647, %v397
    %vm408 = vcmp.eq.f32.partialorder %v407, 8.507059e+37
    %v409 = vand.u32 %v397, 2147483648
    %v410 = vor.u32 1.1754944e-38, %v409
    %v411 = vsel %vm408, %v410, %v406
    %v412 = vmul.f32 %v394, %v411
    %v413 = vpack.c.bf16 %v412, %v412
    %414 = vrot.lane.b32.xlu0 %v135, 80
    %v415 = vpop.permute.xlu0 %414
    %v417 = vsel %vm109, %v413, 0
    %v420 = vsel %vm139, %v415, 0
    %422 = vmatpush.bf16.msra.mxu0 0
    %423 = vmatpush.bf16.msra.mxu0 0
    %424 = vmatpush.bf16.msra.mxu0 0
    %425 = vmatpush.bf16.msra.mxu0 0
    %426 = vmatpush.bf16.msra.mxu0 0
    %427 = vmatpush.bf16.msra.mxu0 0
    %428 = vmatpush.bf16.msra.mxu0 0
    %429 = vmatpush.bf16.msra.mxu0 %v420
    %430 = vmatmul.bf16.gmra.mxu0 %v417
    %v431 = vpop.f32.mrf.mxu0
    %v432 = vadd.f32 0.0, %v431
    %v433 = vpop.f32.mrf.mxu0
    %434 = vdwg.mxu0
    %v435 = vpack.c.bf16 %v432, %v432
    %v438 = vunpack.c.l.b16 %v48
    %v439 = vunpack.c.l.b16 %v49
    %v440 = vpack.c.b16 %v439, %v438
    %v443 = vsel %vm89, %v435, 0
    %445 = vmatpush.bf16.msra.mxu0 0
    %446 = vmatpush.bf16.msra.mxu0 0
    %447 = vmatpush.bf16.msra.mxu0 0
    %448 = vmatpush.bf16.msra.mxu0 0
    %449 = vmatpush.bf16.msra.mxu0 0
    %450 = vmatpush.bf16.msra.mxu0 0
    %451 = vmatpush.bf16.msra.mxu0 0
    %452 = vmatpush.bf16.msra.mxu0 %v440
    %453 = vmatmul.bf16.gmra.mxu0 %v443
    %v454 = vpop.f32.mrf.mxu0
    %v455 = vadd.f32 0.0, %v454
    %v456 = vpop.f32.mrf.mxu0
    %457 = vdwg.mxu0
    %v458 = vadd.f32 %v365, %v455
    %v460 = vperm.slane %v50, 0
    %v462 = vadd.f32 %v458, %v460
    %463 = vst.msk [vmem:[#allocation2] sm:$0xff] %vm51, %v462
    %v464 = vmul.f32 %v67, 0.25
    %v465 = vpack.c.bf16 %v464, %v464
    %v466 = vpack.c.bf16 %v67, %v67
    %468 = vrot.lane.b32.xlu0 %v466, 64
    %v469 = vpop.permute.xlu0 %468
    %v471 = vsel %vm89, %v465, 0
    %v474 = vsel %vm89, %v469, 0
    %476 = vmatpush.bf16.xpose.msra.mxu0 0
    %477 = vmatpush.bf16.xpose.msra.mxu0 0
    %478 = vmatpush.bf16.xpose.msra.mxu0 0
    %479 = vmatpush.bf16.xpose.msra.mxu0 0
    %480 = vmatpush.bf16.xpose.msra.mxu0 0
    %481 = vmatpush.bf16.xpose.msra.mxu0 0
    %482 = vmatpush.bf16.xpose.msra.mxu0 0
    %483 = vmatpush.bf16.xpose.msra.mxu0 %v474
    %484 = vmatmul.bf16.gmra.mxu0 %v471
    %v485 = vpop.f32.mrf.mxu0
    %v486 = vadd.f32 0.0, %v485
    %v487 = vpop.f32.mrf.mxu0
    %488 = vdwg.mxu0
    %v489 = vsel %vm109, %v486, -inf
    %490 = vmax.xlane.f32.xlu0 %v489
    %v491 = vpop.xlane.xlu0 %490
    %v492 = vsub.f32 %v486, %v491
    %v493 = vmul.f32 %v492, 1.442695
    %v494 = vpow.pop %v493
    %v495 = vsel %vm109, %v494, 0.0
    %496 = vadd.xlane.f32.xlu0 %v495
    %v497 = vpop.xlane.xlu0 %496
    %v498 = vrcp.pop %v497
    %v499 = vmul.f32 %v497, %v498
    %v500 = vsub.f32 1.0, %v499
    %v501 = vmul.f32 %v498, %v500
    %v502 = vadd.f32 %v498, %v501
    %vm503 = vweird.f32 %v497
    %vm504 = vweird.f32 %v498
    %vm505 = vmor %vm503, %vm504
    %v506 = vsel %vm505, %v498, %v502
    %v507 = vand.u32 2147483647, %v497
    %vm508 = vcmp.eq.f32.partialorder %v507, 8.507059e+37
    %v509 = vand.u32 %v497, 2147483648
    %v510 = vor.u32 1.1754944e-38, %v509
    %v511 = vsel %vm508, %v510, %v506
    %v512 = vmul.f32 %v494, %v511
    %v513 = vpack.c.bf16 %v512, %v512
    %v514 = vpack.c.bf16 %v81, %v81
    %v516 = vsel %vm109, %v513, 0
    %v519 = vsel %vm139, %v514, 0
    %521 = vmatpush.bf16.msra.mxu0 0
    %522 = vmatpush.bf16.msra.mxu0 0
    %523 = vmatpush.bf16.msra.mxu0 0
    %524 = vmatpush.bf16.msra.mxu0 0
    %525 = vmatpush.bf16.msra.mxu0 0
    %526 = vmatpush.bf16.msra.mxu0 0
    %527 = vmatpush.bf16.msra.mxu0 0
    %528 = vmatpush.bf16.msra.mxu0 %v519
    %529 = vmatmul.bf16.gmra.mxu0 %v516
    %v530 = vpop.f32.mrf.mxu0
    %v531 = vadd.f32 0.0, %v530
    %v532 = vpop.f32.mrf.mxu0
    %533 = vdwg.mxu0
    %v534 = vpack.c.bf16 %v531, %v531
    %536 = vrot.lane.b32.xlu0 %v465, 112
    %v537 = vpop.permute.xlu0 %536
    %538 = vrot.lane.b32.xlu0 %v466, 48
    %v539 = vpop.permute.xlu0 %538
    %v541 = vsel %vm89, %v537, 0
    %v544 = vsel %vm89, %v539, 0
    %546 = vmatpush.bf16.xpose.msra.mxu0 0
    %547 = vmatpush.bf16.xpose.msra.mxu0 0
    %548 = vmatpush.bf16.xpose.msra.mxu0 0
    %549 = vmatpush.bf16.xpose.msra.mxu0 0
    %550 = vmatpush.bf16.xpose.msra.mxu0 0
    %551 = vmatpush.bf16.xpose.msra.mxu0 0
    %552 = vmatpush.bf16.xpose.msra.mxu0 0
    %553 = vmatpush.bf16.xpose.msra.mxu0 %v544
    %554 = vmatmul.bf16.gmra.mxu0 %v541
    %v555 = vpop.f32.mrf.mxu0
    %v556 = vadd.f32 0.0, %v555
    %v557 = vpop.f32.mrf.mxu0
    %558 = vdwg.mxu0
    %v559 = vsel %vm109, %v556, -inf
    %560 = vmax.xlane.f32.xlu0 %v559
    %v561 = vpop.xlane.xlu0 %560
    %v562 = vsub.f32 %v556, %v561
    %v563 = vmul.f32 %v562, 1.442695
    %v564 = vpow.pop %v563
    %v565 = vsel %vm109, %v564, 0.0
    %566 = vadd.xlane.f32.xlu0 %v565
    %v567 = vpop.xlane.xlu0 %566
    %v568 = vrcp.pop %v567
    %v569 = vmul.f32 %v567, %v568
    %v570 = vsub.f32 1.0, %v569
    %v571 = vmul.f32 %v568, %v570
    %v572 = vadd.f32 %v568, %v571
    %vm573 = vweird.f32 %v567
    %vm574 = vweird.f32 %v568
    %vm575 = vmor %vm573, %vm574
    %v576 = vsel %vm575, %v568, %v572
    %v577 = vand.u32 2147483647, %v567
    %vm578 = vcmp.eq.f32.partialorder %v577, 8.507059e+37
    %v579 = vand.u32 %v567, 2147483648
    %v580 = vor.u32 1.1754944e-38, %v579
    %v581 = vsel %vm578, %v580, %v576
    %v582 = vmul.f32 %v564, %v581
    %v583 = vpack.c.bf16 %v582, %v582
    %585 = vrot.lane.b32.xlu0 %v514, 112
    %v586 = vpop.permute.xlu0 %585
    %v588 = vsel %vm109, %v583, 0
    %v591 = vsel %vm139, %v586, 0
    %593 = vmatpush.bf16.msra.mxu0 0
    %594 = vmatpush.bf16.msra.mxu0 0
    %595 = vmatpush.bf16.msra.mxu0 0
    %596 = vmatpush.bf16.msra.mxu0 0
    %597 = vmatpush.bf16.msra.mxu0 0
    %598 = vmatpush.bf16.msra.mxu0 0
    %599 = vmatpush.bf16.msra.mxu0 0
    %600 = vmatpush.bf16.msra.mxu0 %v591
    %601 = vmatmul.bf16.gmra.mxu0 %v588
    %v602 = vpop.f32.mrf.mxu0
    %v603 = vadd.f32 0.0, %v602
    %v604 = vpop.f32.mrf.mxu0
    %605 = vdwg.mxu0
    %v606 = vpack.c.bf16 %v603, %v603
    %v608 = vsel %vm89, %v606, 0
    %610 = vmatpush.bf16.msra.mxu0 0
    %611 = vmatpush.bf16.msra.mxu0 0
    %612 = vmatpush.bf16.msra.mxu0 0
    %613 = vmatpush.bf16.msra.mxu0 0
    %614 = vmatpush.bf16.msra.mxu0 0
    %615 = vmatpush.bf16.msra.mxu0 0
    %616 = vmatpush.bf16.msra.mxu0 0
    %617 = vmatpush.bf16.msra.mxu0 %v233
    %618 = vmatmul.bf16.gmra.mxu0 %v608
    %v619 = vpop.f32.mrf.mxu0
    %v620 = vadd.f32 0.0, %v619
    %v621 = vpop.f32.mrf.mxu0
    %622 = vdwg.mxu0
    %v624 = vsel %vm89, %v534, 0
    %626 = vmatpush.bf16.msra.mxu0 0
    %627 = vmatpush.bf16.msra.mxu0 0
    %628 = vmatpush.bf16.msra.mxu0 0
    %629 = vmatpush.bf16.msra.mxu0 0
    %630 = vmatpush.bf16.msra.mxu0 0
    %631 = vmatpush.bf16.msra.mxu0 0
    %632 = vmatpush.bf16.msra.mxu0 0
    %633 = vmatpush.bf16.msra.mxu0 %v255
    %634 = vmatmul.bf16.gmra.mxu0 %v624
    %v635 = vpop.f32.mrf.mxu0
    %v636 = vadd.f32 %v620, %v635
    %v637 = vpop.f32.mrf.mxu0
    %638 = vdwg.mxu0
    %639 = vrot.lane.b32.xlu0 %v465, 96
    %v640 = vpop.permute.xlu0 %639
    %641 = vrot.lane.b32.xlu0 %v466, 32
    %v642 = vpop.permute.xlu0 %641
    %v644 = vsel %vm89, %v640, 0
    %v647 = vsel %vm89, %v642, 0
    %649 = vmatpush.bf16.xpose.msra.mxu0 0
    %650 = vmatpush.bf16.xpose.msra.mxu0 0
    %651 = vmatpush.bf16.xpose.msra.mxu0 0
    %652 = vmatpush.bf16.xpose.msra.mxu0 0
    %653 = vmatpush.bf16.xpose.msra.mxu0 0
    %654 = vmatpush.bf16.xpose.msra.mxu0 0
    %655 = vmatpush.bf16.xpose.msra.mxu0 0
    %656 = vmatpush.bf16.xpose.msra.mxu0 %v647
    %657 = vmatmul.bf16.gmra.mxu0 %v644
    %v658 = vpop.f32.mrf.mxu0
    %v659 = vadd.f32 0.0, %v658
    %v660 = vpop.f32.mrf.mxu0
    %661 = vdwg.mxu0
    %v662 = vsel %vm109, %v659, -inf
    %663 = vmax.xlane.f32.xlu0 %v662
    %v664 = vpop.xlane.xlu0 %663
    %v665 = vsub.f32 %v659, %v664
    %v666 = vmul.f32 %v665, 1.442695
    %v667 = vpow.pop %v666
    %v668 = vsel %vm109, %v667, 0.0
    %669 = vadd.xlane.f32.xlu0 %v668
    %v670 = vpop.xlane.xlu0 %669
    %v671 = vrcp.pop %v670
    %v672 = vmul.f32 %v670, %v671
    %v673 = vsub.f32 1.0, %v672
    %v674 = vmul.f32 %v671, %v673
    %v675 = vadd.f32 %v671, %v674
    %vm676 = vweird.f32 %v670
    %vm677 = vweird.f32 %v671
    %vm678 = vmor %vm676, %vm677
    %v679 = vsel %vm678, %v671, %v675
    %v680 = vand.u32 2147483647, %v670
    %vm681 = vcmp.eq.f32.partialorder %v680, 8.507059e+37
    %v682 = vand.u32 %v670, 2147483648
    %v683 = vor.u32 1.1754944e-38, %v682
    %v684 = vsel %vm681, %v683, %v679
    %v685 = vmul.f32 %v667, %v684
    %v686 = vpack.c.bf16 %v685, %v685
    %687 = vrot.lane.b32.xlu0 %v514, 96
    %v688 = vpop.permute.xlu0 %687
    %v690 = vsel %vm109, %v686, 0
    %v693 = vsel %vm139, %v688, 0
    %695 = vmatpush.bf16.msra.mxu0 0
    %696 = vmatpush.bf16.msra.mxu0 0
    %697 = vmatpush.bf16.msra.mxu0 0
    %698 = vmatpush.bf16.msra.mxu0 0
    %699 = vmatpush.bf16.msra.mxu0 0
    %700 = vmatpush.bf16.msra.mxu0 0
    %701 = vmatpush.bf16.msra.mxu0 0
    %702 = vmatpush.bf16.msra.mxu0 %v693
    %703 = vmatmul.bf16.gmra.mxu0 %v690
    %v704 = vpop.f32.mrf.mxu0
    %v705 = vadd.f32 0.0, %v704
    %v706 = vpop.f32.mrf.mxu0
    %707 = vdwg.mxu0
    %v708 = vpack.c.bf16 %v705, %v705
    %v710 = vsel %vm89, %v708, 0
    %712 = vmatpush.bf16.msra.mxu0 0
    %713 = vmatpush.bf16.msra.mxu0 0
    %714 = vmatpush.bf16.msra.mxu0 0
    %715 = vmatpush.bf16.msra.mxu0 0
    %716 = vmatpush.bf16.msra.mxu0 0
    %717 = vmatpush.bf16.msra.mxu0 0
    %718 = vmatpush.bf16.msra.mxu0 0
    %719 = vmatpush.bf16.msra.mxu0 %v347
    %720 = vmatmul.bf16.gmra.mxu0 %v710
    %v721 = vpop.f32.mrf.mxu0
    %v722 = vadd.f32 0.0, %v721
    %v723 = vpop.f32.mrf.mxu0
    %724 = vdwg.mxu0
    %v725 = vadd.f32 %v636, %v722
    %726 = vrot.lane.b32.xlu0 %v465, 80
    %v727 = vpop.permute.xlu0 %726
    %728 = vrot.lane.b32.xlu0 %v466, 16
    %v729 = vpop.permute.xlu0 %728
    %v731 = vsel %vm89, %v727, 0
    %v734 = vsel %vm89, %v729, 0
    %736 = vmatpush.bf16.xpose.msra.mxu0 0
    %737 = vmatpush.bf16.xpose.msra.mxu0 0
    %738 = vmatpush.bf16.xpose.msra.mxu0 0
    %739 = vmatpush.bf16.xpose.msra.mxu0 0
    %740 = vmatpush.bf16.xpose.msra.mxu0 0
    %741 = vmatpush.bf16.xpose.msra.mxu0 0
    %742 = vmatpush.bf16.xpose.msra.mxu0 0
    %743 = vmatpush.bf16.xpose.msra.mxu0 %v734
    %744 = vmatmul.bf16.gmra.mxu0 %v731
    %v745 = vpop.f32.mrf.mxu0
    %v746 = vadd.f32 0.0, %v745
    %v747 = vpop.f32.mrf.mxu0
    %748 = vdwg.mxu0
    %v749 = vsel %vm109, %v746, -inf
    %750 = vmax.xlane.f32.xlu0 %v749
    %v751 = vpop.xlane.xlu0 %750
    %v752 = vsub.f32 %v746, %v751
    %v753 = vmul.f32 %v752, 1.442695
    %v754 = vpow.pop %v753
    %v755 = vsel %vm109, %v754, 0.0
    %756 = vadd.xlane.f32.xlu0 %v755
    %v757 = vpop.xlane.xlu0 %756
    %v758 = vrcp.pop %v757
    %v759 = vmul.f32 %v757, %v758
    %v760 = vsub.f32 1.0, %v759
    %v761 = vmul.f32 %v758, %v760
    %v762 = vadd.f32 %v758, %v761
    %vm763 = vweird.f32 %v757
    %vm764 = vweird.f32 %v758
    %vm765 = vmor %vm763, %vm764
    %v766 = vsel %vm765, %v758, %v762
    %v767 = vand.u32 2147483647, %v757
    %vm768 = vcmp.eq.f32.partialorder %v767, 8.507059e+37
    %v769 = vand.u32 %v757, 2147483648
    %v770 = vor.u32 1.1754944e-38, %v769
    %v771 = vsel %vm768, %v770, %v766
    %v772 = vmul.f32 %v754, %v771
    %v773 = vpack.c.bf16 %v772, %v772
    %774 = vrot.lane.b32.xlu0 %v514, 80
    %v775 = vpop.permute.xlu0 %774
    %v777 = vsel %vm109, %v773, 0
    %v780 = vsel %vm139, %v775, 0
    %782 = vmatpush.bf16.msra.mxu0 0
    %783 = vmatpush.bf16.msra.mxu0 0
    %784 = vmatpush.bf16.msra.mxu0 0
    %785 = vmatpush.bf16.msra.mxu0 0
    %786 = vmatpush.bf16.msra.mxu0 0
    %787 = vmatpush.bf16.msra.mxu0 0
    %788 = vmatpush.bf16.msra.mxu0 0
    %789 = vmatpush.bf16.msra.mxu0 %v780
    %790 = vmatmul.bf16.gmra.mxu0 %v777
    %v791 = vpop.f32.mrf.mxu0
    %v792 = vadd.f32 0.0, %v791
    %v793 = vpop.f32.mrf.mxu0
    %794 = vdwg.mxu0
    %v795 = vpack.c.bf16 %v792, %v792
    %v797 = vsel %vm89, %v795, 0
    %799 = vmatpush.bf16.msra.mxu0 0
    %800 = vmatpush.bf16.msra.mxu0 0
    %801 = vmatpush.bf16.msra.mxu0 0
    %802 = vmatpush.bf16.msra.mxu0 0
    %803 = vmatpush.bf16.msra.mxu0 0
    %804 = vmatpush.bf16.msra.mxu0 0
    %805 = vmatpush.bf16.msra.mxu0 0
    %806 = vmatpush.bf16.msra.mxu0 %v440
    %807 = vmatmul.bf16.gmra.mxu0 %v797
    %v808 = vpop.f32.mrf.mxu0
    %v809 = vadd.f32 0.0, %v808
    %v810 = vpop.f32.mrf.mxu0
    %811 = vdwg.mxu0
    %v812 = vadd.f32 %v725, %v809
    %v813 = vadd.f32 %v812, %v460
    %814 = vst.msk [vmem:[#allocation2 + $0x8] sm:$0xff] %vm51, %v813
    // Predicated region
    $region18: #{tpu_custom_call.1} parent=1 // pred_check
      _
    $region19: #{tpu_custom_call.1} parent=1 // pred_check_branch
      %816 = sbr.rel (0) target = $region21
    $region20: #{tpu_custom_call.1} parent=1 // pred_region
      %818 = vsyncadd [#allocation3], 0
      %s819 = sshll.u32 [#allocation2], 4
      %s820 = int_to_ptr.vmem [resolvable:$true] %s819
      %s821 = sshll.u32 %s4, 4
      %s822 = int_to_ptr.hbm [resolvable:$true] %s821
      %827 = dma.vmem_to_hbm [thread:$0]  %s820, 256, %s822, [#allocation3], 128, 128, 8
    $region21: #{tpu_custom_call.1} parent=1 // pred_fallthru
      _
    // Predicated region
    $region22: #{tpu_custom_call.1} parent=1 // pred_check
      _
    $region23: #{tpu_custom_call.1} parent=1 // pred_check_branch
      %829 = sbr.rel (0) target = $region25
    $region24: #{tpu_custom_call.1} parent=1 // pred_region
      %831 = dma.done [#allocation3], 256
    $region25: #{tpu_custom_call.1} parent=1 // pred_fallthru
      _
    %832 = vsyncpa [#allocation3], 1

</llo_original>
